<compile_context>
chip_gen: v7x
topology: tpu7x:2x2x1
jax: 0.10.0
libtpu: 0.0.40
codegen_flags: <defaults>
</compile_context>

<pallas_src>
import math

import jax
import jax.numpy as jnp
from jax import lax
from jax.experimental import pallas as pl
from jax.experimental.pallas import tpu as pltpu

IN_F, OUT_F = 5, 35
DIMS = [(5, 120), (120, 84), (84, 35)]
# Storage (padded) shapes: [in, out] transposed weights.  Only dims that feed
# the MXU are lane/sublane padded; the final out dim stays at the logical 35.
PAD_DIMS = [(5, 128), (128, 128), (128, 35)]


def _round_up(n, m):
    return ((n + m - 1) // m) * m


def qnet_kernel(x_ref, w1_ref, b1_ref, w2_ref, b2_ref, w3_ref, b3_ref, o_ref):
    # One (tb, 5) f32 activation tile; weights/biases are VMEM-resident across
    # the whole grid (constant index maps).
    x = x_ref[...]                      # (tb, 5)  f32
    w1 = w1_ref[...]                    # (5, 128) f32

    # Layer 1 on the VPU: K=5 broadcast-FMAs (outer-product accumulate).
    # Avoids an MXU pass with >90% idle systolic depth and any K-padding of x.
    h1 = b1_ref[...] + x[:, 0:1] * w1[0:1, :]
    for k in range(1, IN_F):
        h1 = h1 + x[:, k : k + 1] * w1[k : k + 1, :]
    h1 = jnp.maximum(h1, 0.0)           # (tb, 128) f32

    # Layers 2/3 on the MXU, f32-faithful (HIGHEST precision), f32 accumulate.
    h2 = jnp.dot(h1, w2_ref[...],
                 precision=lax.Precision.HIGHEST,
                 preferred_element_type=jnp.float32) + b2_ref[...]
    h2 = jnp.maximum(h2, 0.0)           # (tb, 128) f32

    o = jnp.dot(h2, w3_ref[...],
                precision=lax.Precision.HIGHEST,
                preferred_element_type=jnp.float32) + b3_ref[...]
    o_ref[...] = o.astype(o_ref.dtype)  # (tb, 35) f32 — logical-width store


def qnetwork_forward(x, params, *, block_b=4096):
    """x: [B, 5] float32. params: padded (w1,b1,w2,b2,w3,b3). Returns [B, 35] f32."""
    w1, b1, w2, b2, w3, b3 = params
    x = x.astype(jnp.float32)
    B = x.shape[0]

    # Batch tile: multiple of 8 sublanes; at least 2 grid steps when B allows
    # (so the "parallel" batch axis uses both v7x TensorCores); capped at
    # block_b (default 4096 keeps the f32 intermediates well inside the 32 MiB
    # scoped-VMEM default on every generation, incl. v7x's 64 MiB part).
    tb = max(8, min(block_b, _round_up(pl.cdiv(B, 2), 8)))
    grid_n = pl.cdiv(B, tb)

    flops = 2 * B * sum(i * o for i, o in DIMS)
    # Bytes actually DMA'd: streamed x/out tiles (+ padded tail rows) + the
    # VMEM-resident parameters loaded once.
    bytes_accessed = grid_n * tb * (IN_F + OUT_F) * 4 + sum(
        int(p.size) * p.dtype.itemsize for p in params
    )

    return pl.pallas_call(
        qnet_kernel,
        out_shape=jax.ShapeDtypeStruct((B, OUT_F), jnp.float32),
        grid=(grid_n,),
        in_specs=[
            pl.BlockSpec((tb, IN_F), lambda i: (i, 0)),   # x: batch-tiled, full 5-wide last dim
            pl.BlockSpec(w1.shape, lambda i: (0, 0)),     # weights/biases: resident
            pl.BlockSpec(b1.shape, lambda i: (0, 0)),
            pl.BlockSpec(w2.shape, lambda i: (0, 0)),
            pl.BlockSpec(b2.shape, lambda i: (0, 0)),
            pl.BlockSpec(w3.shape, lambda i: (0, 0)),
            pl.BlockSpec(b3.shape, lambda i: (0, 0)),
        ],
        out_specs=pl.BlockSpec((tb, OUT_F), lambda i: (i, 0)),  # logical 35-wide store
        compiler_params=pltpu.CompilerParams(
            dimension_semantics=("parallel",),
        ),
        cost_estimate=pl.CostEstimate(
            flops=flops, transcendentals=0, bytes_accessed=bytes_accessed
        ),
    )(x, w1, b1, w2, b2, w3, b3)


def init_params(key):
    """PyTorch nn.Linear default init U(-1/sqrt(fan_in), 1/sqrt(fan_in)),
    stored transposed as [in, out], zero-padded to lane/sublane-aligned shapes
    (zero padding keeps the math identical to the unpadded network). f32."""
    params = []
    for (fan_in, fan_out), (pin, pout) in zip(DIMS, PAD_DIMS):
        key, kw, kb = jax.random.split(key, 3)
        bound = 1.0 / math.sqrt(fan_in)
        w = jax.random.uniform(kw, (fan_in, fan_out), jnp.float32, -bound, bound)
        b = jax.random.uniform(kb, (fan_out,), jnp.float32, -bound, bound)
        w_p = jnp.zeros((pin, pout), jnp.float32).at[:fan_in, :fan_out].set(w)
        b_p = jnp.zeros((1, pout), jnp.float32).at[0, :fan_out].set(b)
        params.extend([w_p, b_p])
    return tuple(params)


def reference_forward(x, params):
    """Pure-JAX f32 reference (PyTorch semantics); padding columns are zero so
    the padded math equals the unpadded network exactly."""
    w1, b1, w2, b2, w3, b3 = params
    x = x.astype(jnp.float32)
    h1 = jnp.maximum(jnp.dot(x, w1, precision=lax.Precision.HIGHEST) + b1, 0.0)
    h2 = jnp.maximum(jnp.dot(h1, w2, precision=lax.Precision.HIGHEST) + b2, 0.0)
    return jnp.dot(h2, w3, precision=lax.Precision.HIGHEST) + b3


if __name__ == "__main__":
    key = jax.random.PRNGKey(0)
    kx, kx2, kp = jax.random.split(key, 3)
    params = init_params(kp)

    # Small batch (single grid step).
    B = 8
    x = jax.random.normal(kx, (B, IN_F), jnp.float32)
    out = jax.block_until_ready(qnetwork_forward(x, params))
    ref = reference_forward(x, params)
    assert out.shape == (B, OUT_F), out.shape
    assert jnp.allclose(out, ref, atol=1e-4, rtol=1e-4), "mismatch vs reference (B=8)"

    # Non-multiple batch: exercises multi-step grid and the partial last block.
    B2 = 200
    x2 = jax.random.normal(kx2, (B2, IN_F), jnp.float32)
    ref2 = reference_forward(x2, params)

    out2 = jax.block_until_ready(qnetwork_forward(x2, params, block_b=64))
    assert out2.shape == (B2, OUT_F), out2.shape
    assert jnp.allclose(out2, ref2, atol=1e-4, rtol=1e-4), "mismatch vs reference (B=200, tb=64)"

    out3 = jax.block_until_ready(qnetwork_forward(x2, params))  # default tiling (2 grid steps)
    assert jnp.allclose(out3, ref2, atol=1e-4, rtol=1e-4), "mismatch vs reference (B=200, default)"

    print("KERNEL_OK")
</pallas_src>

<mosaic_0001>
module attributes {stable_mosaic.version = 11 : i64} {
  func.func @qnet_kernel(%arg0: i32, %arg1: memref<8x5xf32, #tpu.memory_space<vmem>>, %arg2: memref<5x128xf32, #tpu.memory_space<vmem>>, %arg3: memref<1x128xf32, #tpu.memory_space<vmem>>, %arg4: memref<128x128xf32, #tpu.memory_space<vmem>>, %arg5: memref<1x128xf32, #tpu.memory_space<vmem>>, %arg6: memref<128x35xf32, #tpu.memory_space<vmem>>, %arg7: memref<1x35xf32, #tpu.memory_space<vmem>>, %arg8: memref<8x35xf32, #tpu.memory_space<vmem>>) attributes {dimension_semantics = [#tpu.dimension_semantics<parallel>], iteration_bounds = array<i64: 1>, scalar_prefetch = 0 : i64, scratch_operands = 0 : i64, tpu.core_type = #tpu.core_type<tc>, window_params = [{transform_indices = @transform_0, window_bounds = array<i64: 8, 5>}, {pipeline_mode = #tpu.pipeline_mode<synchronous>, transform_indices = @transform_1, window_bounds = array<i64: 5, 128>}, {pipeline_mode = #tpu.pipeline_mode<synchronous>, transform_indices = @transform_2, window_bounds = array<i64: 1, 128>}, {pipeline_mode = #tpu.pipeline_mode<synchronous>, transform_indices = @transform_3, window_bounds = array<i64: 128, 128>}, {pipeline_mode = #tpu.pipeline_mode<synchronous>, transform_indices = @transform_4, window_bounds = array<i64: 1, 128>}, {pipeline_mode = #tpu.pipeline_mode<synchronous>, transform_indices = @transform_5, window_bounds = array<i64: 128, 35>}, {pipeline_mode = #tpu.pipeline_mode<synchronous>, transform_indices = @transform_6, window_bounds = array<i64: 1, 35>}, {transform_indices = @transform_7, window_bounds = array<i64: 8, 35>}]} {
    %c0 = arith.constant 0 : index
    %c0_0 = arith.constant 0 : index
    %0 = vector.load %arg1[%c0, %c0_0] : memref<8x5xf32, #tpu.memory_space<vmem>>, vector<8x5xf32>
    %c0_1 = arith.constant 0 : index
    %c0_2 = arith.constant 0 : index
    %1 = vector.load %arg2[%c0_1, %c0_2] : memref<5x128xf32, #tpu.memory_space<vmem>>, vector<5x128xf32>
    %c0_3 = arith.constant 0 : index
    %c0_4 = arith.constant 0 : index
    %2 = vector.load %arg3[%c0_3, %c0_4] : memref<1x128xf32, #tpu.memory_space<vmem>>, vector<1x128xf32>
    %3 = vector.extract_strided_slice %0 {offsets = [0, 0], sizes = [8, 1], strides = [1, 1]} : vector<8x5xf32> to vector<8x1xf32>
    %4 = vector.extract_strided_slice %1 {offsets = [0, 0], sizes = [1, 128], strides = [1, 1]} : vector<5x128xf32> to vector<1x128xf32>
    %5 = vector.broadcast %3 : vector<8x1xf32> to vector<8x128xf32>
    %6 = vector.broadcast %4 : vector<1x128xf32> to vector<8x128xf32>
    %7 = arith.mulf %5, %6 : vector<8x128xf32>
    %8 = vector.broadcast %2 : vector<1x128xf32> to vector<8x128xf32>
    %9 = arith.addf %8, %7 : vector<8x128xf32>
    %10 = vector.extract_strided_slice %0 {offsets = [0, 1], sizes = [8, 1], strides = [1, 1]} : vector<8x5xf32> to vector<8x1xf32>
    %11 = vector.extract_strided_slice %1 {offsets = [1, 0], sizes = [1, 128], strides = [1, 1]} : vector<5x128xf32> to vector<1x128xf32>
    %12 = vector.broadcast %10 : vector<8x1xf32> to vector<8x128xf32>
    %13 = vector.broadcast %11 : vector<1x128xf32> to vector<8x128xf32>
    %14 = arith.mulf %12, %13 : vector<8x128xf32>
    %15 = arith.addf %9, %14 : vector<8x128xf32>
    %16 = vector.extract_strided_slice %0 {offsets = [0, 2], sizes = [8, 1], strides = [1, 1]} : vector<8x5xf32> to vector<8x1xf32>
    %17 = vector.extract_strided_slice %1 {offsets = [2, 0], sizes = [1, 128], strides = [1, 1]} : vector<5x128xf32> to vector<1x128xf32>
    %18 = vector.broadcast %16 : vector<8x1xf32> to vector<8x128xf32>
    %19 = vector.broadcast %17 : vector<1x128xf32> to vector<8x128xf32>
    %20 = arith.mulf %18, %19 : vector<8x128xf32>
    %21 = arith.addf %15, %20 : vector<8x128xf32>
    %22 = vector.extract_strided_slice %0 {offsets = [0, 3], sizes = [8, 1], strides = [1, 1]} : vector<8x5xf32> to vector<8x1xf32>
    %23 = vector.extract_strided_slice %1 {offsets = [3, 0], sizes = [1, 128], strides = [1, 1]} : vector<5x128xf32> to vector<1x128xf32>
    %24 = vector.broadcast %22 : vector<8x1xf32> to vector<8x128xf32>
    %25 = vector.broadcast %23 : vector<1x128xf32> to vector<8x128xf32>
    %26 = arith.mulf %24, %25 : vector<8x128xf32>
    %27 = arith.addf %21, %26 : vector<8x128xf32>
    %28 = vector.extract_strided_slice %0 {offsets = [0, 4], sizes = [8, 1], strides = [1, 1]} : vector<8x5xf32> to vector<8x1xf32>
    %29 = vector.extract_strided_slice %1 {offsets = [4, 0], sizes = [1, 128], strides = [1, 1]} : vector<5x128xf32> to vector<1x128xf32>
    %30 = vector.broadcast %28 : vector<8x1xf32> to vector<8x128xf32>
    %31 = vector.broadcast %29 : vector<1x128xf32> to vector<8x128xf32>
    %32 = arith.mulf %30, %31 : vector<8x128xf32>
    %33 = arith.addf %27, %32 : vector<8x128xf32>
    %cst = arith.constant 0.000000e+00 : f32
    %34 = vector.broadcast %cst : f32 to vector<8x128xf32>
    %35 = arith.maximumf %33, %34 : vector<8x128xf32>
    %c0_5 = arith.constant 0 : index
    %c0_6 = arith.constant 0 : index
    %36 = vector.load %arg4[%c0_5, %c0_6] : memref<128x128xf32, #tpu.memory_space<vmem>>, vector<128x128xf32>
    %cst_7 = arith.constant dense<0.000000e+00> : vector<8x128xf32>
    %37 = tpu.matmul %35, %36, %cst_7 {dimension_numbers = #tpu.dot_dimension_numbers<[1], [0], [0], [1], [0, 0, 1, 1], [], []>, precision = #tpu.contract_precision<fp32>} : vector<8x128xf32>, vector<128x128xf32>, vector<8x128xf32> -> vector<8x128xf32>
    %c0_8 = arith.constant 0 : index
    %c0_9 = arith.constant 0 : index
    %38 = vector.load %arg5[%c0_8, %c0_9] : memref<1x128xf32, #tpu.memory_space<vmem>>, vector<1x128xf32>
    %39 = vector.broadcast %38 : vector<1x128xf32> to vector<8x128xf32>
    %40 = arith.addf %37, %39 : vector<8x128xf32>
    %cst_10 = arith.constant 0.000000e+00 : f32
    %41 = vector.broadcast %cst_10 : f32 to vector<8x128xf32>
    %42 = arith.maximumf %40, %41 : vector<8x128xf32>
    %c0_11 = arith.constant 0 : index
    %c0_12 = arith.constant 0 : index
    %43 = vector.load %arg6[%c0_11, %c0_12] : memref<128x35xf32, #tpu.memory_space<vmem>>, vector<128x35xf32>
    %cst_13 = arith.constant dense<0.000000e+00> : vector<8x35xf32>
    %44 = tpu.matmul %42, %43, %cst_13 {dimension_numbers = #tpu.dot_dimension_numbers<[1], [0], [0], [1], [0, 0, 1, 1], [], []>, precision = #tpu.contract_precision<fp32>} : vector<8x128xf32>, vector<128x35xf32>, vector<8x35xf32> -> vector<8x35xf32>
    %c0_14 = arith.constant 0 : index
    %c0_15 = arith.constant 0 : index
    %45 = vector.load %arg7[%c0_14, %c0_15] : memref<1x35xf32, #tpu.memory_space<vmem>>, vector<1x35xf32>
    %46 = vector.broadcast %45 : vector<1x35xf32> to vector<8x35xf32>
    %47 = arith.addf %44, %46 : vector<8x35xf32>
    %c0_16 = arith.constant 0 : index
    %c0_17 = arith.constant 0 : index
    %48 = vector.load %arg8[%c0_16, %c0_17] : memref<8x35xf32, #tpu.memory_space<vmem>>, vector<8x35xf32>
    tpu.vector_store %arg8[%c0_16, %c0_17], %47 {strides = array<i32>} : memref<8x35xf32, #tpu.memory_space<vmem>>, vector<8x35xf32>,
    return
  }
  func.func @transform_0(%arg0: i32) -> (i32, i32) {
    %c0_i32 = arith.constant 0 : i32
    %c0_i32_0 = arith.constant 0 : i32
    return %arg0, %c0_i32 : i32, i32
  }
  func.func @transform_1(%arg0: i32) -> (i32, i32) {
    %c0_i32 = arith.constant 0 : i32
    %c0_i32_0 = arith.constant 0 : i32
    %c0_i32_1 = arith.constant 0 : i32
    return %c0_i32, %c0_i32_0 : i32, i32
  }
  func.func @transform_2(%arg0: i32) -> (i32, i32) {
    %c0_i32 = arith.constant 0 : i32
    %c0_i32_0 = arith.constant 0 : i32
    %c0_i32_1 = arith.constant 0 : i32
    return %c0_i32, %c0_i32_0 : i32, i32
  }
  func.func @transform_3(%arg0: i32) -> (i32, i32) {
    %c0_i32 = arith.constant 0 : i32
    %c0_i32_0 = arith.constant 0 : i32
    %c0_i32_1 = arith.constant 0 : i32
    return %c0_i32, %c0_i32_0 : i32, i32
  }
  func.func @transform_4(%arg0: i32) -> (i32, i32) {
    %c0_i32 = arith.constant 0 : i32
    %c0_i32_0 = arith.constant 0 : i32
    %c0_i32_1 = arith.constant 0 : i32
    return %c0_i32, %c0_i32_0 : i32, i32
  }
  func.func @transform_5(%arg0: i32) -> (i32, i32) {
    %c0_i32 = arith.constant 0 : i32
    %c0_i32_0 = arith.constant 0 : i32
    %c0_i32_1 = arith.constant 0 : i32
    return %c0_i32, %c0_i32_0 : i32, i32
  }
  func.func @transform_6(%arg0: i32) -> (i32, i32) {
    %c0_i32 = arith.constant 0 : i32
    %c0_i32_0 = arith.constant 0 : i32
    %c0_i32_1 = arith.constant 0 : i32
    return %c0_i32, %c0_i32_0 : i32, i32
  }
  func.func @transform_7(%arg0: i32) -> (i32, i32) {
    %c0_i32 = arith.constant 0 : i32
    %c0_i32_0 = arith.constant 0 : i32
    return %arg0, %c0_i32 : i32, i32
  }
}

</mosaic_0001>

<llo_original>
// kernel: tpu_custom_call.1
$region0: #{tpu_custom_call.1}
  #allocation0 [shape = 'u32[]', space=smem, size = 0x4, offset = 0x4, fixed_abs, tag = 'smem constant byte address 0x4 - core index']
  #allocation1 [shape = 'u32[144,128]{1,0:T(1,128)}', space=vmem, size = 0x12000, scoped, tag = 'internal scratch']
  %s0 = inlined_call_operand.vmem [shape: f32[8,5], index: 0, kind: input, shape index: {}]
  %s1 = inlined_call_operand.vmem [shape: f32[5,128], index: 1, kind: input, shape index: {}]
  %s2 = inlined_call_operand.vmem [shape: f32[1,128], index: 2, kind: input, shape index: {}]
  %s3 = inlined_call_operand.vmem [shape: f32[128,128], index: 3, kind: input, shape index: {}]
  %s4 = inlined_call_operand.vmem [shape: f32[1,128], index: 4, kind: input, shape index: {}]
  %s5 = inlined_call_operand.vmem [shape: f32[128,35], index: 5, kind: input, shape index: {}]
  %s6 = inlined_call_operand.vmem [shape: f32[1,35], index: 6, kind: input, shape index: {}]
  %s7 = inlined_call_operand.hbm [shape: f32[8,35], index: 7, kind: output, shape index: {}]
  %s8 = sld [smem:[#allocation0]]
  $region38: #{tpu_custom_call.1} parent=0
    _
  %s10 = ssub.s32 1, %s8
  %s11 = scalar_select 0, %s10, %s8
  $region1: #{tpu_custom_call.1} parent=0
    #allocation2 [shape = 'u8[4096]{0}', space=vmem, size = 0x1000, scoped, tag = 'output window, operand 0, single buffered']
    #allocation3 [shape = 's32[1]{0}', space=sflag, size = 0x4, scoped, tag = 'scoped memory for tpu_custom_call.1']
    %12 = vsyncpa [#allocation3], 0
    // Predicated region
    $region2: #{tpu_custom_call.1} parent=1 // pred_check
      _
    $region3: #{tpu_custom_call.1} parent=1 // pred_check_branch
      %14 = sbr.rel (0) target = $region5
    $region4: #{tpu_custom_call.1} parent=1 // pred_region
      _
    $region5: #{tpu_custom_call.1} parent=1 // pred_fallthru
      _
    // Predicated region
    $region6: #{tpu_custom_call.1} parent=1 // pred_check
      _
    $region7: #{tpu_custom_call.1} parent=1 // pred_check_branch
      %16 = sbr.rel (0) target = $region9
    $region8: #{tpu_custom_call.1} parent=1 // pred_region
      _
    $region9: #{tpu_custom_call.1} parent=1 // pred_fallthru
      _
    // Predicated region
    $region10: #{tpu_custom_call.1} parent=1 // pred_check
      _
    $region11: #{tpu_custom_call.1} parent=1 // pred_check_branch
      %18 = sbr.rel (0) target = $region13
    $region12: #{tpu_custom_call.1} parent=1 // pred_region
      _
    $region13: #{tpu_custom_call.1} parent=1 // pred_fallthru
      _
    // Predicated region
    $region14: #{tpu_custom_call.1} parent=1 // pred_check
      _
    $region15: #{tpu_custom_call.1} parent=1 // pred_check_branch
      %20 = sbr.rel (0) target = $region17
    $region16: #{tpu_custom_call.1} parent=1 // pred_region
      _
    $region17: #{tpu_custom_call.1} parent=1 // pred_fallthru
      _
    // Predicated region
    $region18: #{tpu_custom_call.1} parent=1 // pred_check
      _
    $region19: #{tpu_custom_call.1} parent=1 // pred_check_branch
      %22 = sbr.rel (0) target = $region21
    $region20: #{tpu_custom_call.1} parent=1 // pred_region
      _
    $region21: #{tpu_custom_call.1} parent=1 // pred_fallthru
      _
    // Predicated region
    $region22: #{tpu_custom_call.1} parent=1 // pred_check
      _
    $region23: #{tpu_custom_call.1} parent=1 // pred_check_branch
      %24 = sbr.rel (0) target = $region25
    $region24: #{tpu_custom_call.1} parent=1 // pred_region
      _
    $region25: #{tpu_custom_call.1} parent=1 // pred_fallthru
      _
    // Predicated region
    $region26: #{tpu_custom_call.1} parent=1 // pred_check
      _
    $region27: #{tpu_custom_call.1} parent=1 // pred_check_branch
      %26 = sbr.rel (0) target = $region29
    $region28: #{tpu_custom_call.1} parent=1 // pred_region
      _
    $region29: #{tpu_custom_call.1} parent=1 // pred_fallthru
      _
    %v27 = vld [vmem:[%s0] sm:$0xff]
    %v28 = vld [vmem:[%s1] sm:$0x1f]
    %v29 = vld [vmem:[%s2] sm:$0x1]
    %31 = vset.pattern.permute.xlu0 0
    %32 = vperm.xlu0 %31, %v27
    %v33 = vpop.permute.xlu0 %32
    %v35 = vlaneseq
    %v36 = vshrl.u32 %v35, 7
    %v37 = vsub.s32 0, %v36
    %v38 = vrot.slane %v28, %v37
    %v39 = vmul.f32 %v33, %v38
    %v41 = vlaneseq
    %v42 = vshrl.u32 %v41, 7
    %v43 = vsub.s32 0, %v42
    %v44 = vrot.slane %v29, %v43
    %v46 = vadd.f32 %v44, %v39
    %47 = vset.pattern.permute.xlu0 1
    %48 = vperm.xlu0 %47, %v27
    %v49 = vpop.permute.xlu0 %48
    %v51 = vlaneseq
    %v52 = vshrl.u32 %v51, 7
    %v53 = vsub.s32 1, %v52
    %v54 = vrot.slane %v28, %v53
    %v55 = vmul.f32 %v49, %v54
    %v56 = vadd.f32 %v46, %v55
    %57 = vset.pattern.permute.xlu0 2
    %58 = vperm.xlu0 %57, %v27
    %v59 = vpop.permute.xlu0 %58
    %v61 = vlaneseq
    %v62 = vshrl.u32 %v61, 7
    %v63 = vsub.s32 2, %v62
    %v64 = vrot.slane %v28, %v63
    %v65 = vmul.f32 %v59, %v64
    %v66 = vadd.f32 %v56, %v65
    %67 = vset.pattern.permute.xlu0 3
    %68 = vperm.xlu0 %67, %v27
    %v69 = vpop.permute.xlu0 %68
    %v71 = vlaneseq
    %v72 = vshrl.u32 %v71, 7
    %v73 = vsub.s32 3, %v72
    %v74 = vrot.slane %v28, %v73
    %v75 = vmul.f32 %v69, %v74
    %v76 = vadd.f32 %v66, %v75
    %77 = vset.pattern.permute.xlu0 4
    %78 = vperm.xlu0 %77, %v27
    %v79 = vpop.permute.xlu0 %78
    %v81 = vlaneseq
    %v82 = vshrl.u32 %v81, 7
    %v83 = vsub.s32 4, %v82
    %v84 = vrot.slane %v28, %v83
    %v85 = vmul.f32 %v79, %v84
    %v86 = vadd.f32 %v76, %v85
    %v87 = vmax.f32 %v86, 0.0
    %v88 = vld [vmem:[%s3] sm:$0xff]
    %v89 = vld [vmem:[%s3 + $0x8] sm:$0xff]
    %v90 = vld [vmem:[%s3 + $0x10] sm:$0xff]
    %v91 = vld [vmem:[%s3 + $0x18] sm:$0xff]
    %v92 = vld [vmem:[%s3 + $0x20] sm:$0xff]
    %v93 = vld [vmem:[%s3 + $0x28] sm:$0xff]
    %v94 = vld [vmem:[%s3 + $0x30] sm:$0xff]
    %v95 = vld [vmem:[%s3 + $0x38] sm:$0xff]
    %v96 = vld [vmem:[%s3 + $0x40] sm:$0xff]
    %v97 = vld [vmem:[%s3 + $0x48] sm:$0xff]
    %v98 = vld [vmem:[%s3 + $0x50] sm:$0xff]
    %v99 = vld [vmem:[%s3 + $0x58] sm:$0xff]
    %v100 = vld [vmem:[%s3 + $0x60] sm:$0xff]
    %v101 = vld [vmem:[%s3 + $0x68] sm:$0xff]
    %v102 = vld [vmem:[%s3 + $0x70] sm:$0xff]
    %v103 = vld [vmem:[%s3 + $0x78] sm:$0xff]
    %v104 = vld [vmem:[%s4] sm:$0x1]
    %v106 = vlaneseq
    %v107 = vshrl.u32 %v106, 7
    %v108 = vsub.s32 0, %v107
    %v109 = vrot.slane %v104, %v108
    %111 = vmatprep.subr.mxu0 0.0
    %v112 = vand.u32 %v88, 4294901760
    %113 = vmatpush1.msra.mxu0 %v112
    %114 = vmatprep.subr.mxu0 0.0
    %v115 = vand.u32 %v89, 4294901760
    %116 = vmatpush1.msra.mxu0 %v115
    %117 = vmatprep.subr.mxu0 0.0
    %v118 = vand.u32 %v90, 4294901760
    %119 = vmatpush1.msra.mxu0 %v118
    %120 = vmatprep.subr.mxu0 0.0
    %v121 = vand.u32 %v91, 4294901760
    %122 = vmatpush1.msra.mxu0 %v121
    %123 = vmatprep.subr.mxu0 0.0
    %v124 = vand.u32 %v92, 4294901760
    %125 = vmatpush1.msra.mxu0 %v124
    %126 = vmatprep.subr.mxu0 0.0
    %v127 = vand.u32 %v93, 4294901760
    %128 = vmatpush1.msra.mxu0 %v127
    %129 = vmatprep.subr.mxu0 0.0
    %v130 = vand.u32 %v94, 4294901760
    %131 = vmatpush1.msra.mxu0 %v130
    %132 = vmatprep.subr.mxu0 0.0
    %v133 = vand.u32 %v95, 4294901760
    %134 = vmatpush1.msra.mxu0 %v133
    %135 = vmatprep.subr.mxu0 0.0
    %v136 = vand.u32 %v96, 4294901760
    %137 = vmatpush1.msra.mxu0 %v136
    %138 = vmatprep.subr.mxu0 0.0
    %v139 = vand.u32 %v97, 4294901760
    %140 = vmatpush1.msra.mxu0 %v139
    %141 = vmatprep.subr.mxu0 0.0
    %v142 = vand.u32 %v98, 4294901760
    %143 = vmatpush1.msra.mxu0 %v142
    %144 = vmatprep.subr.mxu0 0.0
    %v145 = vand.u32 %v99, 4294901760
    %146 = vmatpush1.msra.mxu0 %v145
    %147 = vmatprep.subr.mxu0 0.0
    %v148 = vand.u32 %v100, 4294901760
    %149 = vmatpush1.msra.mxu0 %v148
    %150 = vmatprep.subr.mxu0 0.0
    %v151 = vand.u32 %v101, 4294901760
    %152 = vmatpush1.msra.mxu0 %v151
    %153 = vmatprep.subr.mxu0 0.0
    %v154 = vand.u32 %v102, 4294901760
    %155 = vmatpush1.msra.mxu0 %v154
    %156 = vmatprep.subr.mxu0 0.0
    %v157 = vand.u32 %v103, 4294901760
    %158 = vmatpush1.msra.mxu0 %v157
    %159 = vmatprep.subr.mxu0 0.0
    %160 = vmatpush1.msra.mxu0 0.0
    %161 = vmatprep.subr.mxu0 0.0
    %162 = vmatpush1.msra.mxu0 0.0
    %163 = vmatprep.subr.mxu0 0.0
    %164 = vmatpush1.msra.mxu0 0.0
    %165 = vmatprep.subr.mxu0 0.0
    %166 = vmatpush1.msra.mxu0 0.0
    %167 = vmatprep.subr.mxu0 0.0
    %168 = vmatpush1.msra.mxu0 0.0
    %169 = vmatprep.subr.mxu0 0.0
    %170 = vmatpush1.msra.mxu0 0.0
    %171 = vmatprep.subr.mxu0 0.0
    %172 = vmatpush1.msra.mxu0 0.0
    %173 = vmatprep.subr.mxu0 0.0
    %174 = vmatpush1.msra.mxu0 0.0
    %175 = vmatprep.subr.mxu0 0.0
    %176 = vmatpush1.msra.mxu0 0.0
    %177 = vmatprep.subr.mxu0 0.0
    %178 = vmatpush1.msra.mxu0 0.0
    %179 = vmatprep.subr.mxu0 0.0
    %180 = vmatpush1.msra.mxu0 0.0
    %181 = vmatprep.subr.mxu0 0.0
    %182 = vmatpush1.msra.mxu0 0.0
    %183 = vmatprep.subr.mxu0 0.0
    %184 = vmatpush1.msra.mxu0 0.0
    %185 = vmatprep.subr.mxu0 0.0
    %186 = vmatpush1.msra.mxu0 0.0
    %187 = vmatprep.subr.mxu0 0.0
    %188 = vmatpush1.msra.mxu0 0.0
    %189 = vmatprep.subr.mxu0 0.0
    %190 = vmatpush1.msra.mxu0 0.0
    %191 = vmatprep.mubr.f32.mxu0 0.0
    %v192 = vand.u32 %v87, 4294901760
    %v193 = vsub.f32 %v87, %v192
    %v194 = vand.u32 %v193, 4294901760
    %v195 = vsub.f32 %v193, %v194
    %v196 = vand.u32 %v195, 4294901760
    %197 = vmatmul.mubr.f32.gmra.mrb[0].mxu0 %v196
    %v198 = vpop.f32.mrb[0].mxu0
    %v199 = vadd.f32 %v109, %v198
    %v200 = vpop.f32.mrb[0].mxu0
    %201 = vdwg.mxu0
    %202 = vmatprep.subr.mxu0 0.0
    %v203 = vand.u32 %v88, 4294901760
    %v204 = vsub.f32 %v88, %v203
    %v205 = vand.u32 %v204, 4294901760
    %v206 = vsub.f32 %v204, %v205
    %v207 = vand.u32 %v206, 4294901760
    %208 = vmatpush1.msra.mxu0 %v207
    %209 = vmatprep.subr.mxu0 0.0
    %v210 = vand.u32 %v89, 4294901760
    %v211 = vsub.f32 %v89, %v210
    %v212 = vand.u32 %v211, 4294901760
    %v213 = vsub.f32 %v211, %v212
    %v214 = vand.u32 %v213, 4294901760
    %215 = vmatpush1.msra.mxu0 %v214
    %216 = vmatprep.subr.mxu0 0.0
    %v217 = vand.u32 %v90, 4294901760
    %v218 = vsub.f32 %v90, %v217
    %v219 = vand.u32 %v218, 4294901760
    %v220 = vsub.f32 %v218, %v219
    %v221 = vand.u32 %v220, 4294901760
    %222 = vmatpush1.msra.mxu0 %v221
    %223 = vmatprep.subr.mxu0 0.0
    %v224 = vand.u32 %v91, 4294901760
    %v225 = vsub.f32 %v91, %v224
    %v226 = vand.u32 %v225, 4294901760
    %v227 = vsub.f32 %v225, %v226
    %v228 = vand.u32 %v227, 4294901760
    %229 = vmatpush1.msra.mxu0 %v228
    %230 = vmatprep.subr.mxu0 0.0
    %v231 = vand.u32 %v92, 4294901760
    %v232 = vsub.f32 %v92, %v231
    %v233 = vand.u32 %v232, 4294901760
    %v234 = vsub.f32 %v232, %v233
    %v235 = vand.u32 %v234, 4294901760
    %236 = vmatpush1.msra.mxu0 %v235
    %237 = vmatprep.subr.mxu0 0.0
    %v238 = vand.u32 %v93, 4294901760
    %v239 = vsub.f32 %v93, %v238
    %v240 = vand.u32 %v239, 4294901760
    %v241 = vsub.f32 %v239, %v240
    %v242 = vand.u32 %v241, 4294901760
    %243 = vmatpush1.msra.mxu0 %v242
    %244 = vmatprep.subr.mxu0 0.0
    %v245 = vand.u32 %v94, 4294901760
    %v246 = vsub.f32 %v94, %v245
    %v247 = vand.u32 %v246, 4294901760
    %v248 = vsub.f32 %v246, %v247
    %v249 = vand.u32 %v248, 4294901760
    %250 = vmatpush1.msra.mxu0 %v249
    %251 = vmatprep.subr.mxu0 0.0
    %v252 = vand.u32 %v95, 4294901760
    %v253 = vsub.f32 %v95, %v252
    %v254 = vand.u32 %v253, 4294901760
    %v255 = vsub.f32 %v253, %v254
    %v256 = vand.u32 %v255, 4294901760
    %257 = vmatpush1.msra.mxu0 %v256
    %258 = vmatprep.subr.mxu0 0.0
    %v259 = vand.u32 %v96, 4294901760
    %v260 = vsub.f32 %v96, %v259
    %v261 = vand.u32 %v260, 4294901760
    %v262 = vsub.f32 %v260, %v261
    %v263 = vand.u32 %v262, 4294901760
    %264 = vmatpush1.msra.mxu0 %v263
    %265 = vmatprep.subr.mxu0 0.0
    %v266 = vand.u32 %v97, 4294901760
    %v267 = vsub.f32 %v97, %v266
    %v268 = vand.u32 %v267, 4294901760
    %v269 = vsub.f32 %v267, %v268
    %v270 = vand.u32 %v269, 4294901760
    %271 = vmatpush1.msra.mxu0 %v270
    %272 = vmatprep.subr.mxu0 0.0
    %v273 = vand.u32 %v98, 4294901760
    %v274 = vsub.f32 %v98, %v273
    %v275 = vand.u32 %v274, 4294901760
    %v276 = vsub.f32 %v274, %v275
    %v277 = vand.u32 %v276, 4294901760
    %278 = vmatpush1.msra.mxu0 %v277
    %279 = vmatprep.subr.mxu0 0.0
    %v280 = vand.u32 %v99, 4294901760
    %v281 = vsub.f32 %v99, %v280
    %v282 = vand.u32 %v281, 4294901760
    %v283 = vsub.f32 %v281, %v282
    %v284 = vand.u32 %v283, 4294901760
    %285 = vmatpush1.msra.mxu0 %v284
    %286 = vmatprep.subr.mxu0 0.0
    %v287 = vand.u32 %v100, 4294901760
    %v288 = vsub.f32 %v100, %v287
    %v289 = vand.u32 %v288, 4294901760
    %v290 = vsub.f32 %v288, %v289
    %v291 = vand.u32 %v290, 4294901760
    %292 = vmatpush1.msra.mxu0 %v291
    %293 = vmatprep.subr.mxu0 0.0
    %v294 = vand.u32 %v101, 4294901760
    %v295 = vsub.f32 %v101, %v294
    %v296 = vand.u32 %v295, 4294901760
    %v297 = vsub.f32 %v295, %v296
    %v298 = vand.u32 %v297, 4294901760
    %299 = vmatpush1.msra.mxu0 %v298
    %300 = vmatprep.subr.mxu0 0.0
    %v301 = vand.u32 %v102, 4294901760
    %v302 = vsub.f32 %v102, %v301
    %v303 = vand.u32 %v302, 4294901760
    %v304 = vsub.f32 %v302, %v303
    %v305 = vand.u32 %v304, 4294901760
    %306 = vmatpush1.msra.mxu0 %v305
    %307 = vmatprep.subr.mxu0 0.0
    %v308 = vand.u32 %v103, 4294901760
    %v309 = vsub.f32 %v103, %v308
    %v310 = vand.u32 %v309, 4294901760
    %v311 = vsub.f32 %v309, %v310
    %v312 = vand.u32 %v311, 4294901760
    %313 = vmatpush1.msra.mxu0 %v312
    %314 = vmatprep.subr.mxu0 0.0
    %315 = vmatpush1.msra.mxu0 0.0
    %316 = vmatprep.subr.mxu0 0.0
    %317 = vmatpush1.msra.mxu0 0.0
    %318 = vmatprep.subr.mxu0 0.0
    %319 = vmatpush1.msra.mxu0 0.0
    %320 = vmatprep.subr.mxu0 0.0
    %321 = vmatpush1.msra.mxu0 0.0
    %322 = vmatprep.subr.mxu0 0.0
    %323 = vmatpush1.msra.mxu0 0.0
    %324 = vmatprep.subr.mxu0 0.0
    %325 = vmatpush1.msra.mxu0 0.0
    %326 = vmatprep.subr.mxu0 0.0
    %327 = vmatpush1.msra.mxu0 0.0
    %328 = vmatprep.subr.mxu0 0.0
    %329 = vmatpush1.msra.mxu0 0.0
    %330 = vmatprep.subr.mxu0 0.0
    %331 = vmatpush1.msra.mxu0 0.0
    %332 = vmatprep.subr.mxu0 0.0
    %333 = vmatpush1.msra.mxu0 0.0
    %334 = vmatprep.subr.mxu0 0.0
    %335 = vmatpush1.msra.mxu0 0.0
    %336 = vmatprep.subr.mxu0 0.0
    %337 = vmatpush1.msra.mxu0 0.0
    %338 = vmatprep.subr.mxu0 0.0
    %339 = vmatpush1.msra.mxu0 0.0
    %340 = vmatprep.subr.mxu0 0.0
    %341 = vmatpush1.msra.mxu0 0.0
    %342 = vmatprep.subr.mxu0 0.0
    %343 = vmatpush1.msra.mxu0 0.0
    %344 = vmatprep.subr.mxu0 0.0
    %345 = vmatpush1.msra.mxu0 0.0
    %346 = vmatprep.mubr.f32.mxu0 0.0
    %v347 = vand.u32 %v87, 4294901760
    %348 = vmatmul.mubr.f32.gmra.mrb[0].mxu0 %v347
    %v349 = vpop.f32.mrb[0].mxu0
    %v350 = vadd.f32 %v199, %v349
    %v351 = vpop.f32.mrb[0].mxu0
    %352 = vdwg.mxu0
    %353 = vmatprep.subr.mxu0 0.0
    %v354 = vand.u32 %v88, 4294901760
    %v355 = vsub.f32 %v88, %v354
    %356 = vmatpush1.msra.mxu0 %v355
    %357 = vmatprep.subr.mxu0 0.0
    %v358 = vand.u32 %v89, 4294901760
    %v359 = vsub.f32 %v89, %v358
    %360 = vmatpush1.msra.mxu0 %v359
    %361 = vmatprep.subr.mxu0 0.0
    %v362 = vand.u32 %v90, 4294901760
    %v363 = vsub.f32 %v90, %v362
    %364 = vmatpush1.msra.mxu0 %v363
    %365 = vmatprep.subr.mxu0 0.0
    %v366 = vand.u32 %v91, 4294901760
    %v367 = vsub.f32 %v91, %v366
    %368 = vmatpush1.msra.mxu0 %v367
    %369 = vmatprep.subr.mxu0 0.0
    %v370 = vand.u32 %v92, 4294901760
    %v371 = vsub.f32 %v92, %v370
    %372 = vmatpush1.msra.mxu0 %v371
    %373 = vmatprep.subr.mxu0 0.0
    %v374 = vand.u32 %v93, 4294901760
    %v375 = vsub.f32 %v93, %v374
    %376 = vmatpush1.msra.mxu0 %v375
    %377 = vmatprep.subr.mxu0 0.0
    %v378 = vand.u32 %v94, 4294901760
    %v379 = vsub.f32 %v94, %v378
    %380 = vmatpush1.msra.mxu0 %v379
    %381 = vmatprep.subr.mxu0 0.0
    %v382 = vand.u32 %v95, 4294901760
    %v383 = vsub.f32 %v95, %v382
    %384 = vmatpush1.msra.mxu0 %v383
    %385 = vmatprep.subr.mxu0 0.0
    %v386 = vand.u32 %v96, 4294901760
    %v387 = vsub.f32 %v96, %v386
    %388 = vmatpush1.msra.mxu0 %v387
    %389 = vmatprep.subr.mxu0 0.0
    %v390 = vand.u32 %v97, 4294901760
    %v391 = vsub.f32 %v97, %v390
    %392 = vmatpush1.msra.mxu0 %v391
    %393 = vmatprep.subr.mxu0 0.0
    %v394 = vand.u32 %v98, 4294901760
    %v395 = vsub.f32 %v98, %v394
    %396 = vmatpush1.msra.mxu0 %v395
    %397 = vmatprep.subr.mxu0 0.0
    %v398 = vand.u32 %v99, 4294901760
    %v399 = vsub.f32 %v99, %v398
    %400 = vmatpush1.msra.mxu0 %v399
    %401 = vmatprep.subr.mxu0 0.0
    %v402 = vand.u32 %v100, 4294901760
    %v403 = vsub.f32 %v100, %v402
    %404 = vmatpush1.msra.mxu0 %v403
    %405 = vmatprep.subr.mxu0 0.0
    %v406 = vand.u32 %v101, 4294901760
    %v407 = vsub.f32 %v101, %v406
    %408 = vmatpush1.msra.mxu0 %v407
    %409 = vmatprep.subr.mxu0 0.0
    %v410 = vand.u32 %v102, 4294901760
    %v411 = vsub.f32 %v102, %v410
    %412 = vmatpush1.msra.mxu0 %v411
    %413 = vmatprep.subr.mxu0 0.0
    %v414 = vand.u32 %v103, 4294901760
    %v415 = vsub.f32 %v103, %v414
    %416 = vmatpush1.msra.mxu0 %v415
    %417 = vmatprep.subr.mxu0 0.0
    %418 = vmatpush1.msra.mxu0 0.0
    %419 = vmatprep.subr.mxu0 0.0
    %420 = vmatpush1.msra.mxu0 0.0
    %421 = vmatprep.subr.mxu0 0.0
    %422 = vmatpush1.msra.mxu0 0.0
    %423 = vmatprep.subr.mxu0 0.0
    %424 = vmatpush1.msra.mxu0 0.0
    %425 = vmatprep.subr.mxu0 0.0
    %426 = vmatpush1.msra.mxu0 0.0
    %427 = vmatprep.subr.mxu0 0.0
    %428 = vmatpush1.msra.mxu0 0.0
    %429 = vmatprep.subr.mxu0 0.0
    %430 = vmatpush1.msra.mxu0 0.0
    %431 = vmatprep.subr.mxu0 0.0
    %432 = vmatpush1.msra.mxu0 0.0
    %433 = vmatprep.subr.mxu0 0.0
    %434 = vmatpush1.msra.mxu0 0.0
    %435 = vmatprep.subr.mxu0 0.0
    %436 = vmatpush1.msra.mxu0 0.0
    %437 = vmatprep.subr.mxu0 0.0
    %438 = vmatpush1.msra.mxu0 0.0
    %439 = vmatprep.subr.mxu0 0.0
    %440 = vmatpush1.msra.mxu0 0.0
    %441 = vmatprep.subr.mxu0 0.0
    %442 = vmatpush1.msra.mxu0 0.0
    %443 = vmatprep.subr.mxu0 0.0
    %444 = vmatpush1.msra.mxu0 0.0
    %445 = vmatprep.subr.mxu0 0.0
    %446 = vmatpush1.msra.mxu0 0.0
    %447 = vmatprep.subr.mxu0 0.0
    %448 = vmatpush1.msra.mxu0 0.0
    %449 = vmatprep.mubr.f32.mxu0 0.0
    %v450 = vand.u32 %v87, 4294901760
    %v451 = vsub.f32 %v87, %v450
    %452 = vmatmul.mubr.f32.gmra.mrb[0].mxu0 %v451
    %v453 = vpop.f32.mrb[0].mxu0
    %v454 = vadd.f32 %v350, %v453
    %v455 = vpop.f32.mrb[0].mxu0
    %456 = vdwg.mxu0
    %457 = vmatprep.subr.mxu0 0.0
    %v458 = vand.u32 %v88, 4294901760
    %459 = vmatpush1.msra.mxu0 %v458
    %460 = vmatprep.subr.mxu0 0.0
    %v461 = vand.u32 %v89, 4294901760
    %462 = vmatpush1.msra.mxu0 %v461
    %463 = vmatprep.subr.mxu0 0.0
    %v464 = vand.u32 %v90, 4294901760
    %465 = vmatpush1.msra.mxu0 %v464
    %466 = vmatprep.subr.mxu0 0.0
    %v467 = vand.u32 %v91, 4294901760
    %468 = vmatpush1.msra.mxu0 %v467
    %469 = vmatprep.subr.mxu0 0.0
    %v470 = vand.u32 %v92, 4294901760
    %471 = vmatpush1.msra.mxu0 %v470
    %472 = vmatprep.subr.mxu0 0.0
    %v473 = vand.u32 %v93, 4294901760
    %474 = vmatpush1.msra.mxu0 %v473
    %475 = vmatprep.subr.mxu0 0.0
    %v476 = vand.u32 %v94, 4294901760
    %477 = vmatpush1.msra.mxu0 %v476
    %478 = vmatprep.subr.mxu0 0.0
    %v479 = vand.u32 %v95, 4294901760
    %480 = vmatpush1.msra.mxu0 %v479
    %481 = vmatprep.subr.mxu0 0.0
    %v482 = vand.u32 %v96, 4294901760
    %483 = vmatpush1.msra.mxu0 %v482
    %484 = vmatprep.subr.mxu0 0.0
    %v485 = vand.u32 %v97, 4294901760
    %486 = vmatpush1.msra.mxu0 %v485
    %487 = vmatprep.subr.mxu0 0.0
    %v488 = vand.u32 %v98, 4294901760
    %489 = vmatpush1.msra.mxu0 %v488
    %490 = vmatprep.subr.mxu0 0.0
    %v491 = vand.u32 %v99, 4294901760
    %492 = vmatpush1.msra.mxu0 %v491
    %493 = vmatprep.subr.mxu0 0.0
    %v494 = vand.u32 %v100, 4294901760
    %495 = vmatpush1.msra.mxu0 %v494
    %496 = vmatprep.subr.mxu0 0.0
    %v497 = vand.u32 %v101, 4294901760
    %498 = vmatpush1.msra.mxu0 %v497
    %499 = vmatprep.subr.mxu0 0.0
    %v500 = vand.u32 %v102, 4294901760
    %501 = vmatpush1.msra.mxu0 %v500
    %502 = vmatprep.subr.mxu0 0.0
    %v503 = vand.u32 %v103, 4294901760
    %504 = vmatpush1.msra.mxu0 %v503
    %505 = vmatprep.subr.mxu0 0.0
    %506 = vmatpush1.msra.mxu0 0.0
    %507 = vmatprep.subr.mxu0 0.0
    %508 = vmatpush1.msra.mxu0 0.0
    %509 = vmatprep.subr.mxu0 0.0
    %510 = vmatpush1.msra.mxu0 0.0
    %511 = vmatprep.subr.mxu0 0.0
    %512 = vmatpush1.msra.mxu0 0.0
    %513 = vmatprep.subr.mxu0 0.0
    %514 = vmatpush1.msra.mxu0 0.0
    %515 = vmatprep.subr.mxu0 0.0
    %516 = vmatpush1.msra.mxu0 0.0
    %517 = vmatprep.subr.mxu0 0.0
    %518 = vmatpush1.msra.mxu0 0.0
    %519 = vmatprep.subr.mxu0 0.0
    %520 = vmatpush1.msra.mxu0 0.0
    %521 = vmatprep.subr.mxu0 0.0
    %522 = vmatpush1.msra.mxu0 0.0
    %523 = vmatprep.subr.mxu0 0.0
    %524 = vmatpush1.msra.mxu0 0.0
    %525 = vmatprep.subr.mxu0 0.0
    %526 = vmatpush1.msra.mxu0 0.0
    %527 = vmatprep.subr.mxu0 0.0
    %528 = vmatpush1.msra.mxu0 0.0
    %529 = vmatprep.subr.mxu0 0.0
    %530 = vmatpush1.msra.mxu0 0.0
    %531 = vmatprep.subr.mxu0 0.0
    %532 = vmatpush1.msra.mxu0 0.0
    %533 = vmatprep.subr.mxu0 0.0
    %534 = vmatpush1.msra.mxu0 0.0
    %535 = vmatprep.subr.mxu0 0.0
    %536 = vmatpush1.msra.mxu0 0.0
    %537 = vmatprep.mubr.f32.mxu0 0.0
    %v538 = vand.u32 %v87, 4294901760
    %v539 = vsub.f32 %v87, %v538
    %v540 = vand.u32 %v539, 4294901760
    %541 = vmatmul.mubr.f32.gmra.mrb[0].mxu0 %v540
    %v542 = vpop.f32.mrb[0].mxu0
    %v543 = vadd.f32 %v454, %v542
    %v544 = vpop.f32.mrb[0].mxu0
    %545 = vdwg.mxu0
    %546 = vmatprep.subr.mxu0 0.0
    %v547 = vand.u32 %v88, 4294901760
    %v548 = vsub.f32 %v88, %v547
    %v549 = vand.u32 %v548, 4294901760
    %550 = vmatpush1.msra.mxu0 %v549
    %551 = vmatprep.subr.mxu0 0.0
    %v552 = vand.u32 %v89, 4294901760
    %v553 = vsub.f32 %v89, %v552
    %v554 = vand.u32 %v553, 4294901760
    %555 = vmatpush1.msra.mxu0 %v554
    %556 = vmatprep.subr.mxu0 0.0
    %v557 = vand.u32 %v90, 4294901760
    %v558 = vsub.f32 %v90, %v557
    %v559 = vand.u32 %v558, 4294901760
    %560 = vmatpush1.msra.mxu0 %v559
    %561 = vmatprep.subr.mxu0 0.0
    %v562 = vand.u32 %v91, 4294901760
    %v563 = vsub.f32 %v91, %v562
    %v564 = vand.u32 %v563, 4294901760
    %565 = vmatpush1.msra.mxu0 %v564
    %566 = vmatprep.subr.mxu0 0.0
    %v567 = vand.u32 %v92, 4294901760
    %v568 = vsub.f32 %v92, %v567
    %v569 = vand.u32 %v568, 4294901760
    %570 = vmatpush1.msra.mxu0 %v569
    %571 = vmatprep.subr.mxu0 0.0
    %v572 = vand.u32 %v93, 4294901760
    %v573 = vsub.f32 %v93, %v572
    %v574 = vand.u32 %v573, 4294901760
    %575 = vmatpush1.msra.mxu0 %v574
    %576 = vmatprep.subr.mxu0 0.0
    %v577 = vand.u32 %v94, 4294901760
    %v578 = vsub.f32 %v94, %v577
    %v579 = vand.u32 %v578, 4294901760
    %580 = vmatpush1.msra.mxu0 %v579
    %581 = vmatprep.subr.mxu0 0.0
    %v582 = vand.u32 %v95, 4294901760
    %v583 = vsub.f32 %v95, %v582
    %v584 = vand.u32 %v583, 4294901760
    %585 = vmatpush1.msra.mxu0 %v584
    %586 = vmatprep.subr.mxu0 0.0
    %v587 = vand.u32 %v96, 4294901760
    %v588 = vsub.f32 %v96, %v587
    %v589 = vand.u32 %v588, 4294901760
    %590 = vmatpush1.msra.mxu0 %v589
    %591 = vmatprep.subr.mxu0 0.0
    %v592 = vand.u32 %v97, 4294901760
    %v593 = vsub.f32 %v97, %v592
    %v594 = vand.u32 %v593, 4294901760
    %595 = vmatpush1.msra.mxu0 %v594
    %596 = vmatprep.subr.mxu0 0.0
    %v597 = vand.u32 %v98, 4294901760
    %v598 = vsub.f32 %v98, %v597
    %v599 = vand.u32 %v598, 4294901760
    %600 = vmatpush1.msra.mxu0 %v599
    %601 = vmatprep.subr.mxu0 0.0
    %v602 = vand.u32 %v99, 4294901760
    %v603 = vsub.f32 %v99, %v602
    %v604 = vand.u32 %v603, 4294901760
    %605 = vmatpush1.msra.mxu0 %v604
    %606 = vmatprep.subr.mxu0 0.0
    %v607 = vand.u32 %v100, 4294901760
    %v608 = vsub.f32 %v100, %v607
    %v609 = vand.u32 %v608, 4294901760
    %610 = vmatpush1.msra.mxu0 %v609
    %611 = vmatprep.subr.mxu0 0.0
    %v612 = vand.u32 %v101, 4294901760
    %v613 = vsub.f32 %v101, %v612
    %v614 = vand.u32 %v613, 4294901760
    %615 = vmatpush1.msra.mxu0 %v614
    %616 = vmatprep.subr.mxu0 0.0
    %v617 = vand.u32 %v102, 4294901760
    %v618 = vsub.f32 %v102, %v617
    %v619 = vand.u32 %v618, 4294901760
    %620 = vmatpush1.msra.mxu0 %v619
    %621 = vmatprep.subr.mxu0 0.0
    %v622 = vand.u32 %v103, 4294901760
    %v623 = vsub.f32 %v103, %v622
    %v624 = vand.u32 %v623, 4294901760
    %625 = vmatpush1.msra.mxu0 %v624
    %626 = vmatprep.subr.mxu0 0.0
    %627 = vmatpush1.msra.mxu0 0.0
    %628 = vmatprep.subr.mxu0 0.0
    %629 = vmatpush1.msra.mxu0 0.0
    %630 = vmatprep.subr.mxu0 0.0
    %631 = vmatpush1.msra.mxu0 0.0
    %632 = vmatprep.subr.mxu0 0.0
    %633 = vmatpush1.msra.mxu0 0.0
    %634 = vmatprep.subr.mxu0 0.0
    %635 = vmatpush1.msra.mxu0 0.0
    %636 = vmatprep.subr.mxu0 0.0
    %637 = vmatpush1.msra.mxu0 0.0
    %638 = vmatprep.subr.mxu0 0.0
    %639 = vmatpush1.msra.mxu0 0.0
    %640 = vmatprep.subr.mxu0 0.0
    %641 = vmatpush1.msra.mxu0 0.0
    %642 = vmatprep.subr.mxu0 0.0
    %643 = vmatpush1.msra.mxu0 0.0
    %644 = vmatprep.subr.mxu0 0.0
    %645 = vmatpush1.msra.mxu0 0.0
    %646 = vmatprep.subr.mxu0 0.0
    %647 = vmatpush1.msra.mxu0 0.0
    %648 = vmatprep.subr.mxu0 0.0
    %649 = vmatpush1.msra.mxu0 0.0
    %650 = vmatprep.subr.mxu0 0.0
    %651 = vmatpush1.msra.mxu0 0.0
    %652 = vmatprep.subr.mxu0 0.0
    %653 = vmatpush1.msra.mxu0 0.0
    %654 = vmatprep.subr.mxu0 0.0
    %655 = vmatpush1.msra.mxu0 0.0
    %656 = vmatprep.subr.mxu0 0.0
    %657 = vmatpush1.msra.mxu0 0.0
    %658 = vmatprep.mubr.f32.mxu0 0.0
    %v659 = vand.u32 %v87, 4294901760
    %660 = vmatmul.mubr.f32.gmra.mrb[0].mxu0 %v659
    %v661 = vpop.f32.mrb[0].mxu0
    %v662 = vadd.f32 %v543, %v661
    %v663 = vpop.f32.mrb[0].mxu0
    %664 = vdwg.mxu0
    %665 = vmatprep.subr.mxu0 0.0
    %v666 = vand.u32 %v88, 4294901760
    %667 = vmatpush1.msra.mxu0 %v666
    %668 = vmatprep.subr.mxu0 0.0
    %v669 = vand.u32 %v89, 4294901760
    %670 = vmatpush1.msra.mxu0 %v669
    %671 = vmatprep.subr.mxu0 0.0
    %v672 = vand.u32 %v90, 4294901760
    %673 = vmatpush1.msra.mxu0 %v672
    %674 = vmatprep.subr.mxu0 0.0
    %v675 = vand.u32 %v91, 4294901760
    %676 = vmatpush1.msra.mxu0 %v675
    %677 = vmatprep.subr.mxu0 0.0
    %v678 = vand.u32 %v92, 4294901760
    %679 = vmatpush1.msra.mxu0 %v678
    %680 = vmatprep.subr.mxu0 0.0
    %v681 = vand.u32 %v93, 4294901760
    %682 = vmatpush1.msra.mxu0 %v681
    %683 = vmatprep.subr.mxu0 0.0
    %v684 = vand.u32 %v94, 4294901760
    %685 = vmatpush1.msra.mxu0 %v684
    %686 = vmatprep.subr.mxu0 0.0
    %v687 = vand.u32 %v95, 4294901760
    %688 = vmatpush1.msra.mxu0 %v687
    %689 = vmatprep.subr.mxu0 0.0
    %v690 = vand.u32 %v96, 4294901760
    %691 = vmatpush1.msra.mxu0 %v690
    %692 = vmatprep.subr.mxu0 0.0
    %v693 = vand.u32 %v97, 4294901760
    %694 = vmatpush1.msra.mxu0 %v693
    %695 = vmatprep.subr.mxu0 0.0
    %v696 = vand.u32 %v98, 4294901760
    %697 = vmatpush1.msra.mxu0 %v696
    %698 = vmatprep.subr.mxu0 0.0
    %v699 = vand.u32 %v99, 4294901760
    %700 = vmatpush1.msra.mxu0 %v699
    %701 = vmatprep.subr.mxu0 0.0
    %v702 = vand.u32 %v100, 4294901760
    %703 = vmatpush1.msra.mxu0 %v702
    %704 = vmatprep.subr.mxu0 0.0
    %v705 = vand.u32 %v101, 4294901760
    %706 = vmatpush1.msra.mxu0 %v705
    %707 = vmatprep.subr.mxu0 0.0
    %v708 = vand.u32 %v102, 4294901760
    %709 = vmatpush1.msra.mxu0 %v708
    %710 = vmatprep.subr.mxu0 0.0
    %v711 = vand.u32 %v103, 4294901760
    %712 = vmatpush1.msra.mxu0 %v711
    %713 = vmatprep.subr.mxu0 0.0
    %714 = vmatpush1.msra.mxu0 0.0
    %715 = vmatprep.subr.mxu0 0.0
    %716 = vmatpush1.msra.mxu0 0.0
    %717 = vmatprep.subr.mxu0 0.0
    %718 = vmatpush1.msra.mxu0 0.0
    %719 = vmatprep.subr.mxu0 0.0
    %720 = vmatpush1.msra.mxu0 0.0
    %721 = vmatprep.subr.mxu0 0.0
    %722 = vmatpush1.msra.mxu0 0.0
    %723 = vmatprep.subr.mxu0 0.0
    %724 = vmatpush1.msra.mxu0 0.0
    %725 = vmatprep.subr.mxu0 0.0
    %726 = vmatpush1.msra.mxu0 0.0
    %727 = vmatprep.subr.mxu0 0.0
    %728 = vmatpush1.msra.mxu0 0.0
    %729 = vmatprep.subr.mxu0 0.0
    %730 = vmatpush1.msra.mxu0 0.0
    %731 = vmatprep.subr.mxu0 0.0
    %732 = vmatpush1.msra.mxu0 0.0
    %733 = vmatprep.subr.mxu0 0.0
    %734 = vmatpush1.msra.mxu0 0.0
    %735 = vmatprep.subr.mxu0 0.0
    %736 = vmatpush1.msra.mxu0 0.0
    %737 = vmatprep.subr.mxu0 0.0
    %738 = vmatpush1.msra.mxu0 0.0
    %739 = vmatprep.subr.mxu0 0.0
    %740 = vmatpush1.msra.mxu0 0.0
    %741 = vmatprep.subr.mxu0 0.0
    %742 = vmatpush1.msra.mxu0 0.0
    %743 = vmatprep.subr.mxu0 0.0
    %744 = vmatpush1.msra.mxu0 0.0
    %745 = vmatprep.mubr.f32.mxu0 0.0
    %v746 = vand.u32 %v87, 4294901760
    %747 = vmatmul.mubr.f32.gmra.mrb[0].mxu0 %v746
    %v748 = vpop.f32.mrb[0].mxu0
    %v749 = vadd.f32 %v662, %v748
    %v750 = vpop.f32.mrb[0].mxu0
    %751 = vdwg.mxu0
    %v752 = vmax.f32 %v749, 0.0
    %v753 = vld [vmem:[%s5] sm:$0xff]
    %v754 = vld [vmem:[%s5 + $0x8] sm:$0xff]
    %v755 = vld [vmem:[%s5 + $0x10] sm:$0xff]
    %v756 = vld [vmem:[%s5 + $0x18] sm:$0xff]
    %v757 = vld [vmem:[%s5 + $0x20] sm:$0xff]
    %v758 = vld [vmem:[%s5 + $0x28] sm:$0xff]
    %v759 = vld [vmem:[%s5 + $0x30] sm:$0xff]
    %v760 = vld [vmem:[%s5 + $0x38] sm:$0xff]
    %v761 = vld [vmem:[%s5 + $0x40] sm:$0xff]
    %v762 = vld [vmem:[%s5 + $0x48] sm:$0xff]
    %v763 = vld [vmem:[%s5 + $0x50] sm:$0xff]
    %v764 = vld [vmem:[%s5 + $0x58] sm:$0xff]
    %v765 = vld [vmem:[%s5 + $0x60] sm:$0xff]
    %v766 = vld [vmem:[%s5 + $0x68] sm:$0xff]
    %v767 = vld [vmem:[%s5 + $0x70] sm:$0xff]
    %v768 = vld [vmem:[%s5 + $0x78] sm:$0xff]
    %v769 = vld [vmem:[%s6] sm:$0x1]
    %v771 = vlaneseq
    %v772 = vshrl.u32 %v771, 7
    %v773 = vsub.s32 0, %v772
    %v774 = vrot.slane %v769, %v773
    %776 = vmatprep.subr.mxu0 0.0
    %v777 = vand.u32 %v753, 4294901760
    %778 = vmatpush1.msra.mxu0 %v777
    %779 = vmatprep.subr.mxu0 0.0
    %v780 = vand.u32 %v754, 4294901760
    %781 = vmatpush1.msra.mxu0 %v780
    %782 = vmatprep.subr.mxu0 0.0
    %v783 = vand.u32 %v755, 4294901760
    %784 = vmatpush1.msra.mxu0 %v783
    %785 = vmatprep.subr.mxu0 0.0
    %v786 = vand.u32 %v756, 4294901760
    %787 = vmatpush1.msra.mxu0 %v786
    %788 = vmatprep.subr.mxu0 0.0
    %v789 = vand.u32 %v757, 4294901760
    %790 = vmatpush1.msra.mxu0 %v789
    %791 = vmatprep.subr.mxu0 0.0
    %v792 = vand.u32 %v758, 4294901760
    %793 = vmatpush1.msra.mxu0 %v792
    %794 = vmatprep.subr.mxu0 0.0
    %v795 = vand.u32 %v759, 4294901760
    %796 = vmatpush1.msra.mxu0 %v795
    %797 = vmatprep.subr.mxu0 0.0
    %v798 = vand.u32 %v760, 4294901760
    %799 = vmatpush1.msra.mxu0 %v798
    %800 = vmatprep.subr.mxu0 0.0
    %v801 = vand.u32 %v761, 4294901760
    %802 = vmatpush1.msra.mxu0 %v801
    %803 = vmatprep.subr.mxu0 0.0
    %v804 = vand.u32 %v762, 4294901760
    %805 = vmatpush1.msra.mxu0 %v804
    %806 = vmatprep.subr.mxu0 0.0
    %v807 = vand.u32 %v763, 4294901760
    %808 = vmatpush1.msra.mxu0 %v807
    %809 = vmatprep.subr.mxu0 0.0
    %v810 = vand.u32 %v764, 4294901760
    %811 = vmatpush1.msra.mxu0 %v810
    %812 = vmatprep.subr.mxu0 0.0
    %v813 = vand.u32 %v765, 4294901760
    %814 = vmatpush1.msra.mxu0 %v813
    %815 = vmatprep.subr.mxu0 0.0
    %v816 = vand.u32 %v766, 4294901760
    %817 = vmatpush1.msra.mxu0 %v816
    %818 = vmatprep.subr.mxu0 0.0
    %v819 = vand.u32 %v767, 4294901760
    %820 = vmatpush1.msra.mxu0 %v819
    %821 = vmatprep.subr.mxu0 0.0
    %v822 = vand.u32 %v768, 4294901760
    %823 = vmatpush1.msra.mxu0 %v822
    %824 = vmatprep.subr.mxu0 0.0
    %825 = vmatpush1.msra.mxu0 0.0
    %826 = vmatprep.subr.mxu0 0.0
    %827 = vmatpush1.msra.mxu0 0.0
    %828 = vmatprep.subr.mxu0 0.0
    %829 = vmatpush1.msra.mxu0 0.0
    %830 = vmatprep.subr.mxu0 0.0
    %831 = vmatpush1.msra.mxu0 0.0
    %832 = vmatprep.subr.mxu0 0.0
    %833 = vmatpush1.msra.mxu0 0.0
    %834 = vmatprep.subr.mxu0 0.0
    %835 = vmatpush1.msra.mxu0 0.0
    %836 = vmatprep.subr.mxu0 0.0
    %837 = vmatpush1.msra.mxu0 0.0
    %838 = vmatprep.subr.mxu0 0.0
    %839 = vmatpush1.msra.mxu0 0.0
    %840 = vmatprep.subr.mxu0 0.0
    %841 = vmatpush1.msra.mxu0 0.0
    %842 = vmatprep.subr.mxu0 0.0
    %843 = vmatpush1.msra.mxu0 0.0
    %844 = vmatprep.subr.mxu0 0.0
    %845 = vmatpush1.msra.mxu0 0.0
    %846 = vmatprep.subr.mxu0 0.0
    %847 = vmatpush1.msra.mxu0 0.0
    %848 = vmatprep.subr.mxu0 0.0
    %849 = vmatpush1.msra.mxu0 0.0
    %850 = vmatprep.subr.mxu0 0.0
    %851 = vmatpush1.msra.mxu0 0.0
    %852 = vmatprep.subr.mxu0 0.0
    %853 = vmatpush1.msra.mxu0 0.0
    %854 = vmatprep.subr.mxu0 0.0
    %855 = vmatpush1.msra.mxu0 0.0
    %856 = vmatprep.mubr.f32.mxu0 0.0
    %v857 = vand.u32 %v752, 4294901760
    %v858 = vsub.f32 %v752, %v857
    %v859 = vand.u32 %v858, 4294901760
    %v860 = vsub.f32 %v858, %v859
    %v861 = vand.u32 %v860, 4294901760
    %862 = vmatmul.mubr.f32.gmra.mrb[0].mxu0 %v861
    %v863 = vpop.f32.mrb[0].mxu0
    %v864 = vadd.f32 %v774, %v863
    %v865 = vpop.f32.mrb[0].mxu0
    %866 = vdwg.mxu0
    %867 = vmatprep.subr.mxu0 0.0
    %v868 = vand.u32 %v753, 4294901760
    %v869 = vsub.f32 %v753, %v868
    %v870 = vand.u32 %v869, 4294901760
    %v871 = vsub.f32 %v869, %v870
    %v872 = vand.u32 %v871, 4294901760
    %873 = vmatpush1.msra.mxu0 %v872
    %874 = vmatprep.subr.mxu0 0.0
    %v875 = vand.u32 %v754, 4294901760
    %v876 = vsub.f32 %v754, %v875
    %v877 = vand.u32 %v876, 4294901760
    %v878 = vsub.f32 %v876, %v877
    %v879 = vand.u32 %v878, 4294901760
    %880 = vmatpush1.msra.mxu0 %v879
    %881 = vmatprep.subr.mxu0 0.0
    %v882 = vand.u32 %v755, 4294901760
    %v883 = vsub.f32 %v755, %v882
    %v884 = vand.u32 %v883, 4294901760
    %v885 = vsub.f32 %v883, %v884
    %v886 = vand.u32 %v885, 4294901760
    %887 = vmatpush1.msra.mxu0 %v886
    %888 = vmatprep.subr.mxu0 0.0
    %v889 = vand.u32 %v756, 4294901760
    %v890 = vsub.f32 %v756, %v889
    %v891 = vand.u32 %v890, 4294901760
    %v892 = vsub.f32 %v890, %v891
    %v893 = vand.u32 %v892, 4294901760
    %894 = vmatpush1.msra.mxu0 %v893
    %895 = vmatprep.subr.mxu0 0.0
    %v896 = vand.u32 %v757, 4294901760
    %v897 = vsub.f32 %v757, %v896
    %v898 = vand.u32 %v897, 4294901760
    %v899 = vsub.f32 %v897, %v898
    %v900 = vand.u32 %v899, 4294901760
    %901 = vmatpush1.msra.mxu0 %v900
    %902 = vmatprep.subr.mxu0 0.0
    %v903 = vand.u32 %v758, 4294901760
    %v904 = vsub.f32 %v758, %v903
    %v905 = vand.u32 %v904, 4294901760
    %v906 = vsub.f32 %v904, %v905
    %v907 = vand.u32 %v906, 4294901760
    %908 = vmatpush1.msra.mxu0 %v907
    %909 = vmatprep.subr.mxu0 0.0
    %v910 = vand.u32 %v759, 4294901760
    %v911 = vsub.f32 %v759, %v910
    %v912 = vand.u32 %v911, 4294901760
    %v913 = vsub.f32 %v911, %v912
    %v914 = vand.u32 %v913, 4294901760
    %915 = vmatpush1.msra.mxu0 %v914
    %916 = vmatprep.subr.mxu0 0.0
    %v917 = vand.u32 %v760, 4294901760
    %v918 = vsub.f32 %v760, %v917
    %v919 = vand.u32 %v918, 4294901760
    %v920 = vsub.f32 %v918, %v919
    %v921 = vand.u32 %v920, 4294901760
    %922 = vmatpush1.msra.mxu0 %v921
    %923 = vmatprep.subr.mxu0 0.0
    %v924 = vand.u32 %v761, 4294901760
    %v925 = vsub.f32 %v761, %v924
    %v926 = vand.u32 %v925, 4294901760
    %v927 = vsub.f32 %v925, %v926
    %v928 = vand.u32 %v927, 4294901760
    %929 = vmatpush1.msra.mxu0 %v928
    %930 = vmatprep.subr.mxu0 0.0
    %v931 = vand.u32 %v762, 4294901760
    %v932 = vsub.f32 %v762, %v931
    %v933 = vand.u32 %v932, 4294901760
    %v934 = vsub.f32 %v932, %v933
    %v935 = vand.u32 %v934, 4294901760
    %936 = vmatpush1.msra.mxu0 %v935
    %937 = vmatprep.subr.mxu0 0.0
    %v938 = vand.u32 %v763, 4294901760
    %v939 = vsub.f32 %v763, %v938
    %v940 = vand.u32 %v939, 4294901760
    %v941 = vsub.f32 %v939, %v940
    %v942 = vand.u32 %v941, 4294901760
    %943 = vmatpush1.msra.mxu0 %v942
    %944 = vmatprep.subr.mxu0 0.0
    %v945 = vand.u32 %v764, 4294901760
    %v946 = vsub.f32 %v764, %v945
    %v947 = vand.u32 %v946, 4294901760
    %v948 = vsub.f32 %v946, %v947
    %v949 = vand.u32 %v948, 4294901760
    %950 = vmatpush1.msra.mxu0 %v949
    %951 = vmatprep.subr.mxu0 0.0
    %v952 = vand.u32 %v765, 4294901760
    %v953 = vsub.f32 %v765, %v952
    %v954 = vand.u32 %v953, 4294901760
    %v955 = vsub.f32 %v953, %v954
    %v956 = vand.u32 %v955, 4294901760
    %957 = vmatpush1.msra.mxu0 %v956
    %958 = vmatprep.subr.mxu0 0.0
    %v959 = vand.u32 %v766, 4294901760
    %v960 = vsub.f32 %v766, %v959
    %v961 = vand.u32 %v960, 4294901760
    %v962 = vsub.f32 %v960, %v961
    %v963 = vand.u32 %v962, 4294901760
    %964 = vmatpush1.msra.mxu0 %v963
    %965 = vmatprep.subr.mxu0 0.0
    %v966 = vand.u32 %v767, 4294901760
    %v967 = vsub.f32 %v767, %v966
    %v968 = vand.u32 %v967, 4294901760
    %v969 = vsub.f32 %v967, %v968
    %v970 = vand.u32 %v969, 4294901760
    %971 = vmatpush1.msra.mxu0 %v970
    %972 = vmatprep.subr.mxu0 0.0
    %v973 = vand.u32 %v768, 4294901760
    %v974 = vsub.f32 %v768, %v973
    %v975 = vand.u32 %v974, 4294901760
    %v976 = vsub.f32 %v974, %v975
    %v977 = vand.u32 %v976, 4294901760
    %978 = vmatpush1.msra.mxu0 %v977
    %979 = vmatprep.subr.mxu0 0.0
    %980 = vmatpush1.msra.mxu0 0.0
    %981 = vmatprep.subr.mxu0 0.0
    %982 = vmatpush1.msra.mxu0 0.0
    %983 = vmatprep.subr.mxu0 0.0
    %984 = vmatpush1.msra.mxu0 0.0
    %985 = vmatprep.subr.mxu0 0.0
    %986 = vmatpush1.msra.mxu0 0.0
    %987 = vmatprep.subr.mxu0 0.0
    %988 = vmatpush1.msra.mxu0 0.0
    %989 = vmatprep.subr.mxu0 0.0
    %990 = vmatpush1.msra.mxu0 0.0
    %991 = vmatprep.subr.mxu0 0.0
    %992 = vmatpush1.msra.mxu0 0.0
    %993 = vmatprep.subr.mxu0 0.0
    %994 = vmatpush1.msra.mxu0 0.0
    %995 = vmatprep.subr.mxu0 0.0
    %996 = vmatpush1.msra.mxu0 0.0
    %997 = vmatprep.subr.mxu0 0.0
    %998 = vmatpush1.msra.mxu0 0.0
    %999 = vmatprep.subr.mxu0 0.0
    %1000 = vmatpush1.msra.mxu0 0.0
    %1001 = vmatprep.subr.mxu0 0.0
    %1002 = vmatpush1.msra.mxu0 0.0
    %1003 = vmatprep.subr.mxu0 0.0
    %1004 = vmatpush1.msra.mxu0 0.0
    %1005 = vmatprep.subr.mxu0 0.0
    %1006 = vmatpush1.msra.mxu0 0.0
    %1007 = vmatprep.subr.mxu0 0.0
    %1008 = vmatpush1.msra.mxu0 0.0
    %1009 = vmatprep.subr.mxu0 0.0
    %1010 = vmatpush1.msra.mxu0 0.0
    %1011 = vmatprep.mubr.f32.mxu0 0.0
    %v1012 = vand.u32 %v752, 4294901760
    %1013 = vmatmul.mubr.f32.gmra.mrb[0].mxu0 %v1012
    %v1014 = vpop.f32.mrb[0].mxu0
    %v1015 = vadd.f32 %v864, %v1014
    %v1016 = vpop.f32.mrb[0].mxu0
    %1017 = vdwg.mxu0
    %1018 = vmatprep.subr.mxu0 0.0
    %v1019 = vand.u32 %v753, 4294901760
    %v1020 = vsub.f32 %v753, %v1019
    %1021 = vmatpush1.msra.mxu0 %v1020
    %1022 = vmatprep.subr.mxu0 0.0
    %v1023 = vand.u32 %v754, 4294901760
    %v1024 = vsub.f32 %v754, %v1023
    %1025 = vmatpush1.msra.mxu0 %v1024
    %1026 = vmatprep.subr.mxu0 0.0
    %v1027 = vand.u32 %v755, 4294901760
    %v1028 = vsub.f32 %v755, %v1027
    %1029 = vmatpush1.msra.mxu0 %v1028
    %1030 = vmatprep.subr.mxu0 0.0
    %v1031 = vand.u32 %v756, 4294901760
    %v1032 = vsub.f32 %v756, %v1031
    %1033 = vmatpush1.msra.mxu0 %v1032
    %1034 = vmatprep.subr.mxu0 0.0
    %v1035 = vand.u32 %v757, 4294901760
    %v1036 = vsub.f32 %v757, %v1035
    %1037 = vmatpush1.msra.mxu0 %v1036
    %1038 = vmatprep.subr.mxu0 0.0
    %v1039 = vand.u32 %v758, 4294901760
    %v1040 = vsub.f32 %v758, %v1039
    %1041 = vmatpush1.msra.mxu0 %v1040
    %1042 = vmatprep.subr.mxu0 0.0
    %v1043 = vand.u32 %v759, 4294901760
    %v1044 = vsub.f32 %v759, %v1043
    %1045 = vmatpush1.msra.mxu0 %v1044
    %1046 = vmatprep.subr.mxu0 0.0
    %v1047 = vand.u32 %v760, 4294901760
    %v1048 = vsub.f32 %v760, %v1047
    %1049 = vmatpush1.msra.mxu0 %v1048
    %1050 = vmatprep.subr.mxu0 0.0
    %v1051 = vand.u32 %v761, 4294901760
    %v1052 = vsub.f32 %v761, %v1051
    %1053 = vmatpush1.msra.mxu0 %v1052
    %1054 = vmatprep.subr.mxu0 0.0
    %v1055 = vand.u32 %v762, 4294901760
    %v1056 = vsub.f32 %v762, %v1055
    %1057 = vmatpush1.msra.mxu0 %v1056
    %1058 = vmatprep.subr.mxu0 0.0
    %v1059 = vand.u32 %v763, 4294901760
    %v1060 = vsub.f32 %v763, %v1059
    %1061 = vmatpush1.msra.mxu0 %v1060
    %1062 = vmatprep.subr.mxu0 0.0
    %v1063 = vand.u32 %v764, 4294901760
    %v1064 = vsub.f32 %v764, %v1063
    %1065 = vmatpush1.msra.mxu0 %v1064
    %1066 = vmatprep.subr.mxu0 0.0
    %v1067 = vand.u32 %v765, 4294901760
    %v1068 = vsub.f32 %v765, %v1067
    %1069 = vmatpush1.msra.mxu0 %v1068
    %1070 = vmatprep.subr.mxu0 0.0
    %v1071 = vand.u32 %v766, 4294901760
    %v1072 = vsub.f32 %v766, %v1071
    %1073 = vmatpush1.msra.mxu0 %v1072
    %1074 = vmatprep.subr.mxu0 0.0
    %v1075 = vand.u32 %v767, 4294901760
    %v1076 = vsub.f32 %v767, %v1075
    %1077 = vmatpush1.msra.mxu0 %v1076
    %1078 = vmatprep.subr.mxu0 0.0
    %v1079 = vand.u32 %v768, 4294901760
    %v1080 = vsub.f32 %v768, %v1079
    %1081 = vmatpush1.msra.mxu0 %v1080
    %1082 = vmatprep.subr.mxu0 0.0
    %1083 = vmatpush1.msra.mxu0 0.0
    %1084 = vmatprep.subr.mxu0 0.0
    %1085 = vmatpush1.msra.mxu0 0.0
    %1086 = vmatprep.subr.mxu0 0.0
    %1087 = vmatpush1.msra.mxu0 0.0
    %1088 = vmatprep.subr.mxu0 0.0
    %1089 = vmatpush1.msra.mxu0 0.0
    %1090 = vmatprep.subr.mxu0 0.0
    %1091 = vmatpush1.msra.mxu0 0.0
    %1092 = vmatprep.subr.mxu0 0.0
    %1093 = vmatpush1.msra.mxu0 0.0
    %1094 = vmatprep.subr.mxu0 0.0
    %1095 = vmatpush1.msra.mxu0 0.0
    %1096 = vmatprep.subr.mxu0 0.0
    %1097 = vmatpush1.msra.mxu0 0.0
    %1098 = vmatprep.subr.mxu0 0.0
    %1099 = vmatpush1.msra.mxu0 0.0
    %1100 = vmatprep.subr.mxu0 0.0
    %1101 = vmatpush1.msra.mxu0 0.0
    %1102 = vmatprep.subr.mxu0 0.0
    %1103 = vmatpush1.msra.mxu0 0.0
    %1104 = vmatprep.subr.mxu0 0.0
    %1105 = vmatpush1.msra.mxu0 0.0
    %1106 = vmatprep.subr.mxu0 0.0
    %1107 = vmatpush1.msra.mxu0 0.0
    %1108 = vmatprep.subr.mxu0 0.0
    %1109 = vmatpush1.msra.mxu0 0.0
    %1110 = vmatprep.subr.mxu0 0.0
    %1111 = vmatpush1.msra.mxu0 0.0
    %1112 = vmatprep.subr.mxu0 0.0
    %1113 = vmatpush1.msra.mxu0 0.0
    %1114 = vmatprep.mubr.f32.mxu0 0.0
    %v1115 = vand.u32 %v752, 4294901760
    %v1116 = vsub.f32 %v752, %v1115
    %1117 = vmatmul.mubr.f32.gmra.mrb[0].mxu0 %v1116
    %v1118 = vpop.f32.mrb[0].mxu0
    %v1119 = vadd.f32 %v1015, %v1118
    %v1120 = vpop.f32.mrb[0].mxu0
    %1121 = vdwg.mxu0
    %1122 = vmatprep.subr.mxu0 0.0
    %v1123 = vand.u32 %v753, 4294901760
    %1124 = vmatpush1.msra.mxu0 %v1123
    %1125 = vmatprep.subr.mxu0 0.0
    %v1126 = vand.u32 %v754, 4294901760
    %1127 = vmatpush1.msra.mxu0 %v1126
    %1128 = vmatprep.subr.mxu0 0.0
    %v1129 = vand.u32 %v755, 4294901760
    %1130 = vmatpush1.msra.mxu0 %v1129
    %1131 = vmatprep.subr.mxu0 0.0
    %v1132 = vand.u32 %v756, 4294901760
    %1133 = vmatpush1.msra.mxu0 %v1132
    %1134 = vmatprep.subr.mxu0 0.0
    %v1135 = vand.u32 %v757, 4294901760
    %1136 = vmatpush1.msra.mxu0 %v1135
    %1137 = vmatprep.subr.mxu0 0.0
    %v1138 = vand.u32 %v758, 4294901760
    %1139 = vmatpush1.msra.mxu0 %v1138
    %1140 = vmatprep.subr.mxu0 0.0
    %v1141 = vand.u32 %v759, 4294901760
    %1142 = vmatpush1.msra.mxu0 %v1141
    %1143 = vmatprep.subr.mxu0 0.0
    %v1144 = vand.u32 %v760, 4294901760
    %1145 = vmatpush1.msra.mxu0 %v1144
    %1146 = vmatprep.subr.mxu0 0.0
    %v1147 = vand.u32 %v761, 4294901760
    %1148 = vmatpush1.msra.mxu0 %v1147
    %1149 = vmatprep.subr.mxu0 0.0
    %v1150 = vand.u32 %v762, 4294901760
    %1151 = vmatpush1.msra.mxu0 %v1150
    %1152 = vmatprep.subr.mxu0 0.0
    %v1153 = vand.u32 %v763, 4294901760
    %1154 = vmatpush1.msra.mxu0 %v1153
    %1155 = vmatprep.subr.mxu0 0.0
    %v1156 = vand.u32 %v764, 4294901760
    %1157 = vmatpush1.msra.mxu0 %v1156
    %1158 = vmatprep.subr.mxu0 0.0
    %v1159 = vand.u32 %v765, 4294901760
    %1160 = vmatpush1.msra.mxu0 %v1159
    %1161 = vmatprep.subr.mxu0 0.0
    %v1162 = vand.u32 %v766, 4294901760
    %1163 = vmatpush1.msra.mxu0 %v1162
    %1164 = vmatprep.subr.mxu0 0.0
    %v1165 = vand.u32 %v767, 4294901760
    %1166 = vmatpush1.msra.mxu0 %v1165
    %1167 = vmatprep.subr.mxu0 0.0
    %v1168 = vand.u32 %v768, 4294901760
    %1169 = vmatpush1.msra.mxu0 %v1168
    %1170 = vmatprep.subr.mxu0 0.0
    %1171 = vmatpush1.msra.mxu0 0.0
    %1172 = vmatprep.subr.mxu0 0.0
    %1173 = vmatpush1.msra.mxu0 0.0
    %1174 = vmatprep.subr.mxu0 0.0
    %1175 = vmatpush1.msra.mxu0 0.0
    %1176 = vmatprep.subr.mxu0 0.0
    %1177 = vmatpush1.msra.mxu0 0.0
    %1178 = vmatprep.subr.mxu0 0.0
    %1179 = vmatpush1.msra.mxu0 0.0
    %1180 = vmatprep.subr.mxu0 0.0
    %1181 = vmatpush1.msra.mxu0 0.0
    %1182 = vmatprep.subr.mxu0 0.0
    %1183 = vmatpush1.msra.mxu0 0.0
    %1184 = vmatprep.subr.mxu0 0.0
    %1185 = vmatpush1.msra.mxu0 0.0
    %1186 = vmatprep.subr.mxu0 0.0
    %1187 = vmatpush1.msra.mxu0 0.0
    %1188 = vmatprep.subr.mxu0 0.0
    %1189 = vmatpush1.msra.mxu0 0.0
    %1190 = vmatprep.subr.mxu0 0.0
    %1191 = vmatpush1.msra.mxu0 0.0
    %1192 = vmatprep.subr.mxu0 0.0
    %1193 = vmatpush1.msra.mxu0 0.0
    %1194 = vmatprep.subr.mxu0 0.0
    %1195 = vmatpush1.msra.mxu0 0.0
    %1196 = vmatprep.subr.mxu0 0.0
    %1197 = vmatpush1.msra.mxu0 0.0
    %1198 = vmatprep.subr.mxu0 0.0
    %1199 = vmatpush1.msra.mxu0 0.0
    %1200 = vmatprep.subr.mxu0 0.0
    %1201 = vmatpush1.msra.mxu0 0.0
    %1202 = vmatprep.mubr.f32.mxu0 0.0
    %v1203 = vand.u32 %v752, 4294901760
    %v1204 = vsub.f32 %v752, %v1203
    %v1205 = vand.u32 %v1204, 4294901760
    %1206 = vmatmul.mubr.f32.gmra.mrb[0].mxu0 %v1205
    %v1207 = vpop.f32.mrb[0].mxu0
    %v1208 = vadd.f32 %v1119, %v1207
    %v1209 = vpop.f32.mrb[0].mxu0
    %1210 = vdwg.mxu0
    %1211 = vmatprep.subr.mxu0 0.0
    %v1212 = vand.u32 %v753, 4294901760
    %v1213 = vsub.f32 %v753, %v1212
    %v1214 = vand.u32 %v1213, 4294901760
    %1215 = vmatpush1.msra.mxu0 %v1214
    %1216 = vmatprep.subr.mxu0 0.0
    %v1217 = vand.u32 %v754, 4294901760
    %v1218 = vsub.f32 %v754, %v1217
    %v1219 = vand.u32 %v1218, 4294901760
    %1220 = vmatpush1.msra.mxu0 %v1219
    %1221 = vmatprep.subr.mxu0 0.0
    %v1222 = vand.u32 %v755, 4294901760
    %v1223 = vsub.f32 %v755, %v1222
    %v1224 = vand.u32 %v1223, 4294901760
    %1225 = vmatpush1.msra.mxu0 %v1224
    %1226 = vmatprep.subr.mxu0 0.0
    %v1227 = vand.u32 %v756, 4294901760
    %v1228 = vsub.f32 %v756, %v1227
    %v1229 = vand.u32 %v1228, 4294901760
    %1230 = vmatpush1.msra.mxu0 %v1229
    %1231 = vmatprep.subr.mxu0 0.0
    %v1232 = vand.u32 %v757, 4294901760
    %v1233 = vsub.f32 %v757, %v1232
    %v1234 = vand.u32 %v1233, 4294901760
    %1235 = vmatpush1.msra.mxu0 %v1234
    %1236 = vmatprep.subr.mxu0 0.0
    %v1237 = vand.u32 %v758, 4294901760
    %v1238 = vsub.f32 %v758, %v1237
    %v1239 = vand.u32 %v1238, 4294901760
    %1240 = vmatpush1.msra.mxu0 %v1239
    %1241 = vmatprep.subr.mxu0 0.0
    %v1242 = vand.u32 %v759, 4294901760
    %v1243 = vsub.f32 %v759, %v1242
    %v1244 = vand.u32 %v1243, 4294901760
    %1245 = vmatpush1.msra.mxu0 %v1244
    %1246 = vmatprep.subr.mxu0 0.0
    %v1247 = vand.u32 %v760, 4294901760
    %v1248 = vsub.f32 %v760, %v1247
    %v1249 = vand.u32 %v1248, 4294901760
    %1250 = vmatpush1.msra.mxu0 %v1249
    %1251 = vmatprep.subr.mxu0 0.0
    %v1252 = vand.u32 %v761, 4294901760
    %v1253 = vsub.f32 %v761, %v1252
    %v1254 = vand.u32 %v1253, 4294901760
    %1255 = vmatpush1.msra.mxu0 %v1254
    %1256 = vmatprep.subr.mxu0 0.0
    %v1257 = vand.u32 %v762, 4294901760
    %v1258 = vsub.f32 %v762, %v1257
    %v1259 = vand.u32 %v1258, 4294901760
    %1260 = vmatpush1.msra.mxu0 %v1259
    %1261 = vmatprep.subr.mxu0 0.0
    %v1262 = vand.u32 %v763, 4294901760
    %v1263 = vsub.f32 %v763, %v1262
    %v1264 = vand.u32 %v1263, 4294901760
    %1265 = vmatpush1.msra.mxu0 %v1264
    %1266 = vmatprep.subr.mxu0 0.0
    %v1267 = vand.u32 %v764, 4294901760
    %v1268 = vsub.f32 %v764, %v1267
    %v1269 = vand.u32 %v1268, 4294901760
    %1270 = vmatpush1.msra.mxu0 %v1269
    %1271 = vmatprep.subr.mxu0 0.0
    %v1272 = vand.u32 %v765, 4294901760
    %v1273 = vsub.f32 %v765, %v1272
    %v1274 = vand.u32 %v1273, 4294901760
    %1275 = vmatpush1.msra.mxu0 %v1274
    %1276 = vmatprep.subr.mxu0 0.0
    %v1277 = vand.u32 %v766, 4294901760
    %v1278 = vsub.f32 %v766, %v1277
    %v1279 = vand.u32 %v1278, 4294901760
    %1280 = vmatpush1.msra.mxu0 %v1279
    %1281 = vmatprep.subr.mxu0 0.0
    %v1282 = vand.u32 %v767, 4294901760
    %v1283 = vsub.f32 %v767, %v1282
    %v1284 = vand.u32 %v1283, 4294901760
    %1285 = vmatpush1.msra.mxu0 %v1284
    %1286 = vmatprep.subr.mxu0 0.0
    %v1287 = vand.u32 %v768, 4294901760
    %v1288 = vsub.f32 %v768, %v1287
    %v1289 = vand.u32 %v1288, 4294901760
    %1290 = vmatpush1.msra.mxu0 %v1289
    %1291 = vmatprep.subr.mxu0 0.0
    %1292 = vmatpush1.msra.mxu0 0.0
    %1293 = vmatprep.subr.mxu0 0.0
    %1294 = vmatpush1.msra.mxu0 0.0
    %1295 = vmatprep.subr.mxu0 0.0
    %1296 = vmatpush1.msra.mxu0 0.0
    %1297 = vmatprep.subr.mxu0 0.0
    %1298 = vmatpush1.msra.mxu0 0.0
    %1299 = vmatprep.subr.mxu0 0.0
    %1300 = vmatpush1.msra.mxu0 0.0
    %1301 = vmatprep.subr.mxu0 0.0
    %1302 = vmatpush1.msra.mxu0 0.0
    %1303 = vmatprep.subr.mxu0 0.0
    %1304 = vmatpush1.msra.mxu0 0.0
    %1305 = vmatprep.subr.mxu0 0.0
    %1306 = vmatpush1.msra.mxu0 0.0
    %1307 = vmatprep.subr.mxu0 0.0
    %1308 = vmatpush1.msra.mxu0 0.0
    %1309 = vmatprep.subr.mxu0 0.0
    %1310 = vmatpush1.msra.mxu0 0.0
    %1311 = vmatprep.subr.mxu0 0.0
    %1312 = vmatpush1.msra.mxu0 0.0
    %1313 = vmatprep.subr.mxu0 0.0
    %1314 = vmatpush1.msra.mxu0 0.0
    %1315 = vmatprep.subr.mxu0 0.0
    %1316 = vmatpush1.msra.mxu0 0.0
    %1317 = vmatprep.subr.mxu0 0.0
    %1318 = vmatpush1.msra.mxu0 0.0
    %1319 = vmatprep.subr.mxu0 0.0
    %1320 = vmatpush1.msra.mxu0 0.0
    %1321 = vmatprep.subr.mxu0 0.0
    %1322 = vmatpush1.msra.mxu0 0.0
    %1323 = vmatprep.mubr.f32.mxu0 0.0
    %v1324 = vand.u32 %v752, 4294901760
    %1325 = vmatmul.mubr.f32.gmra.mrb[0].mxu0 %v1324
    %v1326 = vpop.f32.mrb[0].mxu0
    %v1327 = vadd.f32 %v1208, %v1326
    %v1328 = vpop.f32.mrb[0].mxu0
    %1329 = vdwg.mxu0
    %1330 = vmatprep.subr.mxu0 0.0
    %v1331 = vand.u32 %v753, 4294901760
    %1332 = vmatpush1.msra.mxu0 %v1331
    %1333 = vmatprep.subr.mxu0 0.0
    %v1334 = vand.u32 %v754, 4294901760
    %1335 = vmatpush1.msra.mxu0 %v1334
    %1336 = vmatprep.subr.mxu0 0.0
    %v1337 = vand.u32 %v755, 4294901760
    %1338 = vmatpush1.msra.mxu0 %v1337
    %1339 = vmatprep.subr.mxu0 0.0
    %v1340 = vand.u32 %v756, 4294901760
    %1341 = vmatpush1.msra.mxu0 %v1340
    %1342 = vmatprep.subr.mxu0 0.0
    %v1343 = vand.u32 %v757, 4294901760
    %1344 = vmatpush1.msra.mxu0 %v1343
    %1345 = vmatprep.subr.mxu0 0.0
    %v1346 = vand.u32 %v758, 4294901760
    %1347 = vmatpush1.msra.mxu0 %v1346
    %1348 = vmatprep.subr.mxu0 0.0
    %v1349 = vand.u32 %v759, 4294901760
    %1350 = vmatpush1.msra.mxu0 %v1349
    %1351 = vmatprep.subr.mxu0 0.0
    %v1352 = vand.u32 %v760, 4294901760
    %1353 = vmatpush1.msra.mxu0 %v1352
    %1354 = vmatprep.subr.mxu0 0.0
    %v1355 = vand.u32 %v761, 4294901760
    %1356 = vmatpush1.msra.mxu0 %v1355
    %1357 = vmatprep.subr.mxu0 0.0
    %v1358 = vand.u32 %v762, 4294901760
    %1359 = vmatpush1.msra.mxu0 %v1358
    %1360 = vmatprep.subr.mxu0 0.0
    %v1361 = vand.u32 %v763, 4294901760
    %1362 = vmatpush1.msra.mxu0 %v1361
    %1363 = vmatprep.subr.mxu0 0.0
    %v1364 = vand.u32 %v764, 4294901760
    %1365 = vmatpush1.msra.mxu0 %v1364
    %1366 = vmatprep.subr.mxu0 0.0
    %v1367 = vand.u32 %v765, 4294901760
    %1368 = vmatpush1.msra.mxu0 %v1367
    %1369 = vmatprep.subr.mxu0 0.0
    %v1370 = vand.u32 %v766, 4294901760
    %1371 = vmatpush1.msra.mxu0 %v1370
    %1372 = vmatprep.subr.mxu0 0.0
    %v1373 = vand.u32 %v767, 4294901760
    %1374 = vmatpush1.msra.mxu0 %v1373
    %1375 = vmatprep.subr.mxu0 0.0
    %v1376 = vand.u32 %v768, 4294901760
    %1377 = vmatpush1.msra.mxu0 %v1376
    %1378 = vmatprep.subr.mxu0 0.0
    %1379 = vmatpush1.msra.mxu0 0.0
    %1380 = vmatprep.subr.mxu0 0.0
    %1381 = vmatpush1.msra.mxu0 0.0
    %1382 = vmatprep.subr.mxu0 0.0
    %1383 = vmatpush1.msra.mxu0 0.0
    %1384 = vmatprep.subr.mxu0 0.0
    %1385 = vmatpush1.msra.mxu0 0.0
    %1386 = vmatprep.subr.mxu0 0.0
    %1387 = vmatpush1.msra.mxu0 0.0
    %1388 = vmatprep.subr.mxu0 0.0
    %1389 = vmatpush1.msra.mxu0 0.0
    %1390 = vmatprep.subr.mxu0 0.0
    %1391 = vmatpush1.msra.mxu0 0.0
    %1392 = vmatprep.subr.mxu0 0.0
    %1393 = vmatpush1.msra.mxu0 0.0
    %1394 = vmatprep.subr.mxu0 0.0
    %1395 = vmatpush1.msra.mxu0 0.0
    %1396 = vmatprep.subr.mxu0 0.0
    %1397 = vmatpush1.msra.mxu0 0.0
    %1398 = vmatprep.subr.mxu0 0.0
    %1399 = vmatpush1.msra.mxu0 0.0
    %1400 = vmatprep.subr.mxu0 0.0
    %1401 = vmatpush1.msra.mxu0 0.0
    %1402 = vmatprep.subr.mxu0 0.0
    %1403 = vmatpush1.msra.mxu0 0.0
    %1404 = vmatprep.subr.mxu0 0.0
    %1405 = vmatpush1.msra.mxu0 0.0
    %1406 = vmatprep.subr.mxu0 0.0
    %1407 = vmatpush1.msra.mxu0 0.0
    %1408 = vmatprep.subr.mxu0 0.0
    %1409 = vmatpush1.msra.mxu0 0.0
    %1410 = vmatprep.mubr.f32.mxu0 0.0
    %v1411 = vand.u32 %v752, 4294901760
    %1412 = vmatmul.mubr.f32.gmra.mrb[0].mxu0 %v1411
    %v1413 = vpop.f32.mrb[0].mxu0
    %v1414 = vadd.f32 %v1327, %v1413
    %v1415 = vpop.f32.mrb[0].mxu0
    %1416 = vdwg.mxu0
    %vm1417 = vcmask 285696
    %1418 = vst.msk [vmem:[#allocation2] sm:$0xff] %vm1417, %v1414
    // Predicated region
    $region30: #{tpu_custom_call.1} parent=1 // pred_check
      _
    $region31: #{tpu_custom_call.1} parent=1 // pred_check_branch
      %1420 = sbr.rel (0) target = $region33
    $region32: #{tpu_custom_call.1} parent=1 // pred_region
      %s1422 = ssub.s32 128, 128
      %1423 = vsyncadd [#allocation3], %s1422
      %s1425 = sshll.u32 [#allocation2], 4
      %s1426 = int_to_ptr.vmem [resolvable:$true] %s1425
      %1428 = dma.vmem_to_hbm [thread:$0]  %s1426, 128, %s7, [#allocation3]
    $region33: #{tpu_custom_call.1} parent=1 // pred_fallthru
      _
    // Predicated region
    $region34: #{tpu_custom_call.1} parent=1 // pred_check
      _
    $region35: #{tpu_custom_call.1} parent=1 // pred_check_branch
      %1430 = sbr.rel (0) target = $region37
    $region36: #{tpu_custom_call.1} parent=1 // pred_region
      %1431 = dma.done [#allocation3], 128
    $region37: #{tpu_custom_call.1} parent=1 // pred_fallthru
      _
    %1432 = vsyncpa [#allocation3], 1

</llo_original>
